<compile_context>
chip_gen: v6e
topology: v6e:2x2x1
jax: 0.10.0
libtpu: 0.0.40
codegen_flags: <defaults>
</compile_context>

<pallas_src>
import math

import jax
import jax.numpy as jnp
from jax.experimental import pallas as pl
from jax.experimental.pallas import tpu as pltpu  # noqa: F401  (TPU backend)

LN_EPS = 1e-5  # PyTorch nn.LayerNorm default


# ----------------------------- shared math ---------------------------------- #
def _norm(x):
    """LayerNorm without affine (gamma/beta are folded into the weights)."""
    mean = jnp.mean(x, axis=-1, keepdims=True)
    var = jnp.mean((x - mean) ** 2, axis=-1, keepdims=True)
    return (x - mean) * jax.lax.rsqrt(var + LN_EPS)


def _layernorm(x, g, b):
    return _norm(x) * g + b


def _cma(m1, m2, ln1g, ln1b, ln2g, ln2b, wq, bq, wk, bk, wv, bv, wo, bo):
    """Reference CrossModalAttention.forward for a single batch element."""
    embed_dim = wq.shape[1]
    scaling = embed_dim ** (-0.5)
    x1 = _layernorm(m1, ln1g, ln1b)
    x2 = _layernorm(m2, ln2g, ln2b)
    q = jnp.dot(x1, wq, preferred_element_type=jnp.float32) + bq
    k = jnp.dot(x2, wk, preferred_element_type=jnp.float32) + bk
    v = jnp.dot(x2, wv, preferred_element_type=jnp.float32) + bv
    scores = jax.lax.dot_general(
        q, k, (((1,), (1,)), ((), ())),
        preferred_element_type=jnp.float32) * scaling
    scores = scores - jnp.max(scores, axis=-1, keepdims=True)
    p = jnp.exp(scores)
    attn = p / jnp.sum(p, axis=-1, keepdims=True)
    ctx = jnp.dot(attn, v, preferred_element_type=jnp.float32)
    return jnp.dot(ctx, wo, preferred_element_type=jnp.float32) + bo


# ----------------------------- parameters ----------------------------------- #
def init_params(key, text_dim, audio_dim, video_dim, embed_dim):
    """Deterministic synthetic parameters (PyTorch nn.Linear-style init)."""
    def linear(k, fan_in, fan_out):
        k1, k2 = jax.random.split(k)
        bound = 1.0 / math.sqrt(fan_in)
        w = jax.random.uniform(k1, (fan_in, fan_out), jnp.float32, -bound, bound)
        b = jax.random.uniform(k2, (1, fan_out), jnp.float32, -bound, bound)
        return w, b

    ks = jax.random.split(key, 9)
    p = {}
    # cma_a: CrossModalAttention(text_dim, audio_dim, embed_dim)
    p["a_ln1g"] = jnp.ones((1, text_dim), jnp.float32)
    p["a_ln1b"] = jnp.zeros((1, text_dim), jnp.float32)
    p["a_ln2g"] = jnp.ones((1, audio_dim), jnp.float32)
    p["a_ln2b"] = jnp.zeros((1, audio_dim), jnp.float32)
    p["a_wq"], p["a_bq"] = linear(ks[0], text_dim, embed_dim)
    p["a_wk"], p["a_bk"] = linear(ks[1], audio_dim, embed_dim)
    p["a_wv"], p["a_bv"] = linear(ks[2], audio_dim, embed_dim)
    p["a_wo"], p["a_bo"] = linear(ks[3], embed_dim, text_dim)
    # cma_v: CrossModalAttention(text_dim, video_dim, embed_dim)
    p["v_ln1g"] = jnp.ones((1, text_dim), jnp.float32)
    p["v_ln1b"] = jnp.zeros((1, text_dim), jnp.float32)
    p["v_ln2g"] = jnp.ones((1, video_dim), jnp.float32)
    p["v_ln2b"] = jnp.zeros((1, video_dim), jnp.float32)
    p["v_wq"], p["v_bq"] = linear(ks[4], text_dim, embed_dim)
    p["v_wk"], p["v_bk"] = linear(ks[5], video_dim, embed_dim)
    p["v_wv"], p["v_bv"] = linear(ks[6], video_dim, embed_dim)
    p["v_wo"], p["v_bo"] = linear(ks[7], embed_dim, text_dim)
    # encoder-layer layernorm + fc
    p["ln_g"] = jnp.ones((1, text_dim), jnp.float32)
    p["ln_b"] = jnp.zeros((1, text_dim), jnp.float32)
    p["fc_w"], p["fc_b"] = linear(ks[8], text_dim, text_dim)
    return p


def pack_params(p, embed_dim):
    """Fold LN affines + attention scaling into the projection weights and
    pack all 28 parameter tensors into 4 slabs (2 weight, 2 bias)."""
    scaling = embed_dim ** (-0.5)

    def fold_ln(g, b, w, wb):
        # (norm(x)*g + b) @ w + wb  ==  norm(x) @ (g.T * w) + (b @ w + wb)
        return g.reshape(-1, 1) * w, b.reshape(1, -1) @ w + wb

    a_wq, a_bq = fold_ln(p["a_ln1g"], p["a_ln1b"], p["a_wq"], p["a_bq"])
    v_wq, v_bq = fold_ln(p["v_ln1g"], p["v_ln1b"], p["v_wq"], p["v_bq"])
    a_wk, a_bk = fold_ln(p["a_ln2g"], p["a_ln2b"], p["a_wk"], p["a_bk"])
    a_wv, a_bv = fold_ln(p["a_ln2g"], p["a_ln2b"], p["a_wv"], p["a_bv"])
    v_wk, v_bk = fold_ln(p["v_ln2g"], p["v_ln2b"], p["v_wk"], p["v_bk"])
    v_wv, v_bv = fold_ln(p["v_ln2g"], p["v_ln2b"], p["v_wv"], p["v_bv"])
    fc_w, fc_b = fold_ln(p["ln_g"], p["ln_b"], p["fc_w"], p["fc_b"])

    # Q projections of both CMA branches side-by-side (scaling folded in).
    wq = jnp.concatenate([a_wq, v_wq], axis=1) * scaling       # (Dt, 2E)
    bq = jnp.concatenate([a_bq, v_bq], axis=1) * scaling       # (1, 2E)
    # Fused K|V projections per modality.
    wkv_a = jnp.concatenate([a_wk, a_wv], axis=1)              # (Da, 2E)
    bkv_a = jnp.concatenate([a_bk, a_bv], axis=1)              # (1, 2E)
    wkv_v = jnp.concatenate([v_wk, v_wv], axis=1)              # (Dv, 2E)
    bkv_v = jnp.concatenate([v_bk, v_bv], axis=1)              # (1, 2E)
    # Output projections stacked (out_a + out_v == [ctx_a|ctx_v] @ [wo_a; wo_v]).
    wo = jnp.concatenate([p["a_wo"], p["v_wo"]], axis=0)       # (2E, Dt)
    bo = p["a_bo"] + p["v_bo"]                                 # (1, Dt)

    w_in = jnp.concatenate([wq, wkv_a, wkv_v], axis=0)         # (Dt+Da+Dv, 2E)
    w_out = jnp.concatenate([wo, fc_w], axis=0)                # (2E+Dt, Dt)
    b_in = jnp.concatenate([bq, bkv_a, bkv_v], axis=0)         # (3, 2E)
    b_out = jnp.concatenate([bo, fc_b], axis=0)                # (2, Dt)
    return w_in, w_out, b_in, b_out


# ------------------------------ Pallas wrapper ------------------------------- #
def crossmodal_encoder(text, audio, video, params, num_layers=1):
    B, Lt, Dt = text.shape
    _, La, Da = audio.shape
    _, Lv, Dv = video.shape
    E = params["a_wq"].shape[1]

    w_in, w_out, b_in, b_out = pack_params(params, E)

    # Flatten batch into rows: feeds the MXU B*L rows per matmul and lets the
    # final LN/fc/residual run on a single 2-D slab.
    text2 = text.reshape(B * Lt, Dt)
    audio2 = audio.reshape(B * La, Da)
    video2 = video.reshape(B * Lv, Dv)

    def kernel(text_ref, audio_ref, video_ref,
               w_in_ref, w_out_ref, b_in_ref, b_out_ref, out_ref):
        text_f = text_ref[...]                                    # (B*Lt, Dt)

        # Fused Q / K|V projections (LN affine + 1/sqrt(E) scaling pre-folded).
        # Row-slices of w_in_ref start at 0, Dt, Dt+Da — all multiples of 8,
        # so the sublane windows are aligned (no relayout copies).
        q_all = jnp.dot(_norm(text_f), w_in_ref[0:Dt, :],
                        preferred_element_type=jnp.float32) + b_in_ref[0:1, :]
        kv_a = jnp.dot(_norm(audio_ref[...]), w_in_ref[Dt:Dt + Da, :],
                       preferred_element_type=jnp.float32) + b_in_ref[1:2, :]
        kv_v = jnp.dot(_norm(video_ref[...]), w_in_ref[Dt + Da:Dt + Da + Dv, :],
                       preferred_element_type=jnp.float32) + b_in_ref[2:3, :]

        q3 = q_all.reshape(B, Lt, 2 * E)     # [q_a*scale | q_v*scale]
        kva = kv_a.reshape(B, La, 2 * E)     # [k_a | v_a]
        kvv = kv_v.reshape(B, Lv, 2 * E)     # [k_v | v_v]

        def attend(q, kv):
            k, v = kv[:, :, :E], kv[:, :, E:]
            s = jnp.einsum("bqd,bkd->bqk", q, k,
                           preferred_element_type=jnp.float32)
            s = s - jnp.max(s, axis=-1, keepdims=True)
            p = jnp.exp(s)
            # approx=False keeps agreement with the f32 reference tight;
            # approx=True would push the divide onto the otherwise-idle EUP.
            p = p * pl.reciprocal(jnp.sum(p, axis=-1, keepdims=True))
            return jnp.einsum("bqk,bkd->bqd", p, v,
                              preferred_element_type=jnp.float32)

        ctx_a = attend(q3[:, :, :E], kva)    # (B, Lt, E)
        ctx_v = attend(q3[:, :, E:], kvv)    # (B, Lt, E)
        ctx = jnp.concatenate(
            [ctx_a.reshape(B * Lt, E), ctx_v.reshape(B * Lt, E)], axis=-1)

        # Single fused output projection: out_a + out_v (+ both biases) + text.
        h = (jnp.dot(ctx, w_out_ref[0:2 * E, :],
                     preferred_element_type=jnp.float32)
             + b_out_ref[0:1, :] + text_f)
        # Encoder-layer LayerNorm (gamma/beta folded into fc) + fc + residual.
        hf = (jnp.dot(_norm(h), w_out_ref[2 * E:2 * E + Dt, :],
                      preferred_element_type=jnp.float32) + b_out_ref[1:2, :])
        out_ref[...] = hf + h                # attn_dropout(p=0.5) = identity

    # Everything fits comfortably in VMEM at these sizes, so a single gridless
    # invocation (whole arrays as full VMEM blocks) avoids per-step pipeline
    # overhead and cuts the DMA count to 7 inputs + 1 output.
    layer = pl.pallas_call(
        kernel,
        out_shape=jax.ShapeDtypeStruct((B * Lt, Dt), jnp.float32),
    )

    # In the reference module every "layer" is the SAME CrossmodalEncoderLayer
    # instance applied to the ORIGINAL text, so all num_layers iterations yield
    # identical output: a single kernel launch is sufficient and faithful.
    out = text
    if num_layers >= 1:
        out = layer(text2, audio2, video2, w_in, w_out, b_in, b_out)
        out = out.reshape(B, Lt, Dt)
    return out


# --------------------------- pure-JAX reference ------------------------------ #
def reference(text, audio, video, p, num_layers=1):
    def cma(m1, m2, pre):
        return _cma(m1, m2,
                    p[pre + "_ln1g"], p[pre + "_ln1b"],
                    p[pre + "_ln2g"], p[pre + "_ln2b"],
                    p[pre + "_wq"], p[pre + "_bq"],
                    p[pre + "_wk"], p[pre + "_bk"],
                    p[pre + "_wv"], p[pre + "_bv"],
                    p[pre + "_wo"], p[pre + "_bo"])

    def layer_one(t, a, v):
        h = cma(t, a, "a") + cma(t, v, "v") + t
        resid = h
        hn = _layernorm(h, p["ln_g"], p["ln_b"])
        hf = jnp.dot(hn, p["fc_w"], preferred_element_type=jnp.float32) + p["fc_b"]
        return hf + resid

    out = text
    for _ in range(num_layers):
        out = jax.vmap(layer_one)(text, audio, video)
    return out


# -------------------------------- main --------------------------------------- #
if __name__ == "__main__":
    B = 2
    Lt, La, Lv = 8, 8, 8
    text_dim, audio_dim, video_dim, embed_dim = 32, 16, 24, 32

    key = jax.random.PRNGKey(0)
    k_t, k_a, k_v, k_p = jax.random.split(key, 4)
    text = jax.random.normal(k_t, (B, Lt, text_dim), jnp.float32)
    audio = jax.random.normal(k_a, (B, La, audio_dim), jnp.float32)
    video = jax.random.normal(k_v, (B, Lv, video_dim), jnp.float32)
    params = init_params(k_p, text_dim, audio_dim, video_dim, embed_dim)

    out = crossmodal_encoder(text, audio, video, params, num_layers=1)
    out = jax.block_until_ready(out)

    ref = reference(text, audio, video, params, num_layers=1)
    assert out.shape == (B, Lt, text_dim)
    assert jnp.allclose(out, ref, atol=2e-4, rtol=2e-4), \
        "Pallas kernel mismatch vs reference"

    print("KERNEL_OK")
</pallas_src>

<mosaic_0001>
module attributes {stable_mosaic.version = 11 : i64} {
  func.func @kernel(%arg0: memref<16x32xf32, #tpu.memory_space<vmem>>, %arg1: memref<16x16xf32, #tpu.memory_space<vmem>>, %arg2: memref<16x24xf32, #tpu.memory_space<vmem>>, %arg3: memref<72x64xf32, #tpu.memory_space<vmem>>, %arg4: memref<96x32xf32, #tpu.memory_space<vmem>>, %arg5: memref<3x64xf32, #tpu.memory_space<vmem>>, %arg6: memref<2x32xf32, #tpu.memory_space<vmem>>, %arg7: memref<16x32xf32, #tpu.memory_space<vmem>>) attributes {dimension_semantics = [], scalar_prefetch = 0 : i64, scratch_operands = 0 : i64, tpu.core_type = #tpu.core_type<tc>} {
    %c0 = arith.constant 0 : index
    %c0_0 = arith.constant 0 : index
    %0 = vector.load %arg0[%c0, %c0_0] : memref<16x32xf32, #tpu.memory_space<vmem>>, vector<16x32xf32>
    %cst = arith.constant dense<0.000000e+00> : vector<16xf32>
    %1 = vector.multi_reduction <add>, %0, %cst [1] : vector<16x32xf32> to vector<16xf32>
    %2 = vector.shape_cast %1 : vector<16xf32> to vector<16x1xf32>
    %cst_1 = arith.constant 3.200000e+01 : f32
    %3 = vector.broadcast %cst_1 : f32 to vector<16x1xf32>
    %4 = arith.divf %2, %3 : vector<16x1xf32>
    %5 = vector.broadcast %4 : vector<16x1xf32> to vector<16x32xf32>
    %6 = arith.subf %0, %5 : vector<16x32xf32>
    %7 = arith.mulf %6, %6 : vector<16x32xf32>
    %cst_2 = arith.constant dense<0.000000e+00> : vector<16xf32>
    %8 = vector.multi_reduction <add>, %7, %cst_2 [1] : vector<16x32xf32> to vector<16xf32>
    %9 = vector.shape_cast %8 : vector<16xf32> to vector<16x1xf32>
    %cst_3 = arith.constant 3.200000e+01 : f32
    %10 = vector.broadcast %cst_3 : f32 to vector<16x1xf32>
    %11 = arith.divf %9, %10 : vector<16x1xf32>
    %12 = vector.broadcast %4 : vector<16x1xf32> to vector<16x32xf32>
    %13 = arith.subf %0, %12 : vector<16x32xf32>
    %cst_4 = arith.constant 9.99999974E-6 : f32
    %14 = vector.broadcast %cst_4 : f32 to vector<16x1xf32>
    %15 = arith.addf %11, %14 : vector<16x1xf32>
    %16 = math.rsqrt %15 : vector<16x1xf32>
    %17 = vector.broadcast %16 : vector<16x1xf32> to vector<16x32xf32>
    %18 = arith.mulf %13, %17 : vector<16x32xf32>
    %c0_5 = arith.constant 0 : index
    %c0_6 = arith.constant 0 : index
    %19 = vector.load %arg3[%c0_5, %c0_6] : memref<72x64xf32, #tpu.memory_space<vmem>>, vector<32x64xf32>
    %cst_7 = arith.constant dense<0.000000e+00> : vector<16x64xf32>
    %20 = tpu.matmul %18, %19, %cst_7 {dimension_numbers = #tpu.dot_dimension_numbers<[1], [0], [0], [1], [0, 0, 1, 1], [], []>} : vector<16x32xf32>, vector<32x64xf32>, vector<16x64xf32> -> vector<16x64xf32>
    %c0_8 = arith.constant 0 : index
    %c0_9 = arith.constant 0 : index
    %21 = vector.load %arg5[%c0_8, %c0_9] : memref<3x64xf32, #tpu.memory_space<vmem>>, vector<1x64xf32>
    %22 = vector.broadcast %21 : vector<1x64xf32> to vector<16x64xf32>
    %23 = arith.addf %20, %22 : vector<16x64xf32>
    %c0_10 = arith.constant 0 : index
    %c0_11 = arith.constant 0 : index
    %24 = vector.load %arg1[%c0_10, %c0_11] : memref<16x16xf32, #tpu.memory_space<vmem>>, vector<16x16xf32>
    %cst_12 = arith.constant dense<0.000000e+00> : vector<16xf32>
    %25 = vector.multi_reduction <add>, %24, %cst_12 [1] : vector<16x16xf32> to vector<16xf32>
    %26 = vector.shape_cast %25 : vector<16xf32> to vector<16x1xf32>
    %cst_13 = arith.constant 1.600000e+01 : f32
    %27 = vector.broadcast %cst_13 : f32 to vector<16x1xf32>
    %28 = arith.divf %26, %27 : vector<16x1xf32>
    %29 = vector.broadcast %28 : vector<16x1xf32> to vector<16x16xf32>
    %30 = arith.subf %24, %29 : vector<16x16xf32>
    %31 = arith.mulf %30, %30 : vector<16x16xf32>
    %cst_14 = arith.constant dense<0.000000e+00> : vector<16xf32>
    %32 = vector.multi_reduction <add>, %31, %cst_14 [1] : vector<16x16xf32> to vector<16xf32>
    %33 = vector.shape_cast %32 : vector<16xf32> to vector<16x1xf32>
    %cst_15 = arith.constant 1.600000e+01 : f32
    %34 = vector.broadcast %cst_15 : f32 to vector<16x1xf32>
    %35 = arith.divf %33, %34 : vector<16x1xf32>
    %36 = vector.broadcast %28 : vector<16x1xf32> to vector<16x16xf32>
    %37 = arith.subf %24, %36 : vector<16x16xf32>
    %cst_16 = arith.constant 9.99999974E-6 : f32
    %38 = vector.broadcast %cst_16 : f32 to vector<16x1xf32>
    %39 = arith.addf %35, %38 : vector<16x1xf32>
    %40 = math.rsqrt %39 : vector<16x1xf32>
    %41 = vector.broadcast %40 : vector<16x1xf32> to vector<16x16xf32>
    %42 = arith.mulf %37, %41 : vector<16x16xf32>
    %c32 = arith.constant 32 : index
    %c0_17 = arith.constant 0 : index
    %43 = vector.load %arg3[%c32, %c0_17] : memref<72x64xf32, #tpu.memory_space<vmem>>, vector<16x64xf32>
    %cst_18 = arith.constant dense<0.000000e+00> : vector<16x64xf32>
    %44 = tpu.matmul %42, %43, %cst_18 {dimension_numbers = #tpu.dot_dimension_numbers<[1], [0], [0], [1], [0, 0, 1, 1], [], []>} : vector<16x16xf32>, vector<16x64xf32>, vector<16x64xf32> -> vector<16x64xf32>
    %c1 = arith.constant 1 : index
    %c0_19 = arith.constant 0 : index
    %45 = vector.load %arg5[%c1, %c0_19] : memref<3x64xf32, #tpu.memory_space<vmem>>, vector<1x64xf32>
    %46 = vector.broadcast %45 : vector<1x64xf32> to vector<16x64xf32>
    %47 = arith.addf %44, %46 : vector<16x64xf32>
    %c0_20 = arith.constant 0 : index
    %c0_21 = arith.constant 0 : index
    %48 = vector.load %arg2[%c0_20, %c0_21] : memref<16x24xf32, #tpu.memory_space<vmem>>, vector<16x24xf32>
    %cst_22 = arith.constant dense<0.000000e+00> : vector<16xf32>
    %49 = vector.multi_reduction <add>, %48, %cst_22 [1] : vector<16x24xf32> to vector<16xf32>
    %50 = vector.shape_cast %49 : vector<16xf32> to vector<16x1xf32>
    %cst_23 = arith.constant 2.400000e+01 : f32
    %51 = vector.broadcast %cst_23 : f32 to vector<16x1xf32>
    %52 = arith.divf %50, %51 : vector<16x1xf32>
    %53 = vector.broadcast %52 : vector<16x1xf32> to vector<16x24xf32>
    %54 = arith.subf %48, %53 : vector<16x24xf32>
    %55 = arith.mulf %54, %54 : vector<16x24xf32>
    %cst_24 = arith.constant dense<0.000000e+00> : vector<16xf32>
    %56 = vector.multi_reduction <add>, %55, %cst_24 [1] : vector<16x24xf32> to vector<16xf32>
    %57 = vector.shape_cast %56 : vector<16xf32> to vector<16x1xf32>
    %cst_25 = arith.constant 2.400000e+01 : f32
    %58 = vector.broadcast %cst_25 : f32 to vector<16x1xf32>
    %59 = arith.divf %57, %58 : vector<16x1xf32>
    %60 = vector.broadcast %52 : vector<16x1xf32> to vector<16x24xf32>
    %61 = arith.subf %48, %60 : vector<16x24xf32>
    %cst_26 = arith.constant 9.99999974E-6 : f32
    %62 = vector.broadcast %cst_26 : f32 to vector<16x1xf32>
    %63 = arith.addf %59, %62 : vector<16x1xf32>
    %64 = math.rsqrt %63 : vector<16x1xf32>
    %65 = vector.broadcast %64 : vector<16x1xf32> to vector<16x24xf32>
    %66 = arith.mulf %61, %65 : vector<16x24xf32>
    %c48 = arith.constant 48 : index
    %c0_27 = arith.constant 0 : index
    %67 = vector.load %arg3[%c48, %c0_27] : memref<72x64xf32, #tpu.memory_space<vmem>>, vector<24x64xf32>
    %cst_28 = arith.constant dense<0.000000e+00> : vector<16x64xf32>
    %68 = tpu.matmul %66, %67, %cst_28 {dimension_numbers = #tpu.dot_dimension_numbers<[1], [0], [0], [1], [0, 0, 1, 1], [], []>} : vector<16x24xf32>, vector<24x64xf32>, vector<16x64xf32> -> vector<16x64xf32>
    %c2 = arith.constant 2 : index
    %c0_29 = arith.constant 0 : index
    %69 = vector.load %arg5[%c2, %c0_29] : memref<3x64xf32, #tpu.memory_space<vmem>>, vector<1x64xf32>
    %70 = vector.broadcast %69 : vector<1x64xf32> to vector<16x64xf32>
    %71 = arith.addf %68, %70 : vector<16x64xf32>
    %72 = vector.shape_cast %23 : vector<16x64xf32> to vector<2x8x64xf32>
    %73 = vector.shape_cast %47 : vector<16x64xf32> to vector<2x8x64xf32>
    %74 = vector.shape_cast %71 : vector<16x64xf32> to vector<2x8x64xf32>
    %75 = vector.extract_strided_slice %72 {offsets = [0, 0, 0], sizes = [2, 8, 32], strides = [1, 1, 1]} : vector<2x8x64xf32> to vector<2x8x32xf32>
    %76 = vector.extract_strided_slice %73 {offsets = [0, 0, 0], sizes = [2, 8, 32], strides = [1, 1, 1]} : vector<2x8x64xf32> to vector<2x8x32xf32>
    %77 = vector.extract_strided_slice %73 {offsets = [0, 0, 32], sizes = [2, 8, 32], strides = [1, 1, 1]} : vector<2x8x64xf32> to vector<2x8x32xf32>
    "tpu.trace_start"() <{level = 10 : i32, message = "bqd,bkd->bqk"}> : () -> ()
    %cst_30 = arith.constant dense<0.000000e+00> : vector<2x8x8xf32>
    %78 = tpu.matmul %75, %76, %cst_30 {dimension_numbers = #tpu.dot_dimension_numbers<[2], [2], [1], [1], [0, 0, 0, 1, 1, 1], [0], [0]>} : vector<2x8x32xf32>, vector<2x8x32xf32>, vector<2x8x8xf32> -> vector<2x8x8xf32>
    "tpu.trace_stop"() : () -> ()
    %cst_31 = arith.constant dense<0xFF800000> : vector<2x8xf32>
    %79 = vector.multi_reduction <maximumf>, %78, %cst_31 [2] : vector<2x8x8xf32> to vector<2x8xf32>
    %80 = vector.shape_cast %79 : vector<2x8xf32> to vector<2x8x1xf32>
    %81 = vector.broadcast %80 : vector<2x8x1xf32> to vector<2x8x8xf32>
    %82 = arith.subf %78, %81 : vector<2x8x8xf32>
    %83 = math.exp %82 : vector<2x8x8xf32>
    %cst_32 = arith.constant dense<0.000000e+00> : vector<2x8xf32>
    %84 = vector.multi_reduction <add>, %83, %cst_32 [2] : vector<2x8x8xf32> to vector<2x8xf32>
    %85 = vector.shape_cast %84 : vector<2x8xf32> to vector<2x8x1xf32>
    %86 = tpu.reciprocal %85 : vector<2x8x1xf32> -> vector<2x8x1xf32>
    %87 = vector.broadcast %86 : vector<2x8x1xf32> to vector<2x8x8xf32>
    %88 = arith.mulf %83, %87 : vector<2x8x8xf32>
    "tpu.trace_start"() <{level = 10 : i32, message = "bqk,bkd->bqd"}> : () -> ()
    %cst_33 = arith.constant dense<0.000000e+00> : vector<2x8x32xf32>
    %89 = tpu.matmul %88, %77, %cst_33 {dimension_numbers = #tpu.dot_dimension_numbers<[2], [1], [1], [2], [0, 0, 0, 1, 1, 2], [0], [0]>} : vector<2x8x8xf32>, vector<2x8x32xf32>, vector<2x8x32xf32> -> vector<2x8x32xf32>
    "tpu.trace_stop"() : () -> ()
    %90 = vector.extract_strided_slice %72 {offsets = [0, 0, 32], sizes = [2, 8, 32], strides = [1, 1, 1]} : vector<2x8x64xf32> to vector<2x8x32xf32>
    %91 = vector.extract_strided_slice %74 {offsets = [0, 0, 0], sizes = [2, 8, 32], strides = [1, 1, 1]} : vector<2x8x64xf32> to vector<2x8x32xf32>
    %92 = vector.extract_strided_slice %74 {offsets = [0, 0, 32], sizes = [2, 8, 32], strides = [1, 1, 1]} : vector<2x8x64xf32> to vector<2x8x32xf32>
    "tpu.trace_start"() <{level = 10 : i32, message = "bqd,bkd->bqk"}> : () -> ()
    %cst_34 = arith.constant dense<0.000000e+00> : vector<2x8x8xf32>
    %93 = tpu.matmul %90, %91, %cst_34 {dimension_numbers = #tpu.dot_dimension_numbers<[2], [2], [1], [1], [0, 0, 0, 1, 1, 1], [0], [0]>} : vector<2x8x32xf32>, vector<2x8x32xf32>, vector<2x8x8xf32> -> vector<2x8x8xf32>
    "tpu.trace_stop"() : () -> ()
    %cst_35 = arith.constant dense<0xFF800000> : vector<2x8xf32>
    %94 = vector.multi_reduction <maximumf>, %93, %cst_35 [2] : vector<2x8x8xf32> to vector<2x8xf32>
    %95 = vector.shape_cast %94 : vector<2x8xf32> to vector<2x8x1xf32>
    %96 = vector.broadcast %95 : vector<2x8x1xf32> to vector<2x8x8xf32>
    %97 = arith.subf %93, %96 : vector<2x8x8xf32>
    %98 = math.exp %97 : vector<2x8x8xf32>
    %cst_36 = arith.constant dense<0.000000e+00> : vector<2x8xf32>
    %99 = vector.multi_reduction <add>, %98, %cst_36 [2] : vector<2x8x8xf32> to vector<2x8xf32>
    %100 = vector.shape_cast %99 : vector<2x8xf32> to vector<2x8x1xf32>
    %101 = tpu.reciprocal %100 : vector<2x8x1xf32> -> vector<2x8x1xf32>
    %102 = vector.broadcast %101 : vector<2x8x1xf32> to vector<2x8x8xf32>
    %103 = arith.mulf %98, %102 : vector<2x8x8xf32>
    "tpu.trace_start"() <{level = 10 : i32, message = "bqk,bkd->bqd"}> : () -> ()
    %cst_37 = arith.constant dense<0.000000e+00> : vector<2x8x32xf32>
    %104 = tpu.matmul %103, %92, %cst_37 {dimension_numbers = #tpu.dot_dimension_numbers<[2], [1], [1], [2], [0, 0, 0, 1, 1, 2], [0], [0]>} : vector<2x8x8xf32>, vector<2x8x32xf32>, vector<2x8x32xf32> -> vector<2x8x32xf32>
    "tpu.trace_stop"() : () -> ()
    %105 = vector.shape_cast %89 : vector<2x8x32xf32> to vector<16x32xf32>
    %106 = vector.shape_cast %104 : vector<2x8x32xf32> to vector<16x32xf32>
    %107 = tpu.concatenate %105, %106 in 1 : vector<16x32xf32>, vector<16x32xf32> -> vector<16x64xf32>
    %c0_38 = arith.constant 0 : index
    %c0_39 = arith.constant 0 : index
    %108 = vector.load %arg4[%c0_38, %c0_39] : memref<96x32xf32, #tpu.memory_space<vmem>>, vector<64x32xf32>
    %cst_40 = arith.constant dense<0.000000e+00> : vector<16x32xf32>
    %109 = tpu.matmul %107, %108, %cst_40 {dimension_numbers = #tpu.dot_dimension_numbers<[1], [0], [0], [1], [0, 0, 1, 1], [], []>} : vector<16x64xf32>, vector<64x32xf32>, vector<16x32xf32> -> vector<16x32xf32>
    %c0_41 = arith.constant 0 : index
    %c0_42 = arith.constant 0 : index
    %110 = vector.load %arg6[%c0_41, %c0_42] : memref<2x32xf32, #tpu.memory_space<vmem>>, vector<1x32xf32>
    %111 = vector.broadcast %110 : vector<1x32xf32> to vector<16x32xf32>
    %112 = arith.addf %109, %111 : vector<16x32xf32>
    %113 = arith.addf %112, %0 : vector<16x32xf32>
    %cst_43 = arith.constant dense<0.000000e+00> : vector<16xf32>
    %114 = vector.multi_reduction <add>, %113, %cst_43 [1] : vector<16x32xf32> to vector<16xf32>
    %115 = vector.shape_cast %114 : vector<16xf32> to vector<16x1xf32>
    %cst_44 = arith.constant 3.200000e+01 : f32
    %116 = vector.broadcast %cst_44 : f32 to vector<16x1xf32>
    %117 = arith.divf %115, %116 : vector<16x1xf32>
    %118 = vector.broadcast %117 : vector<16x1xf32> to vector<16x32xf32>
    %119 = arith.subf %113, %118 : vector<16x32xf32>
    %120 = arith.mulf %119, %119 : vector<16x32xf32>
    %cst_45 = arith.constant dense<0.000000e+00> : vector<16xf32>
    %121 = vector.multi_reduction <add>, %120, %cst_45 [1] : vector<16x32xf32> to vector<16xf32>
    %122 = vector.shape_cast %121 : vector<16xf32> to vector<16x1xf32>
    %cst_46 = arith.constant 3.200000e+01 : f32
    %123 = vector.broadcast %cst_46 : f32 to vector<16x1xf32>
    %124 = arith.divf %122, %123 : vector<16x1xf32>
    %125 = vector.broadcast %117 : vector<16x1xf32> to vector<16x32xf32>
    %126 = arith.subf %113, %125 : vector<16x32xf32>
    %cst_47 = arith.constant 9.99999974E-6 : f32
    %127 = vector.broadcast %cst_47 : f32 to vector<16x1xf32>
    %128 = arith.addf %124, %127 : vector<16x1xf32>
    %129 = math.rsqrt %128 : vector<16x1xf32>
    %130 = vector.broadcast %129 : vector<16x1xf32> to vector<16x32xf32>
    %131 = arith.mulf %126, %130 : vector<16x32xf32>
    %c64 = arith.constant 64 : index
    %c0_48 = arith.constant 0 : index
    %132 = vector.load %arg4[%c64, %c0_48] : memref<96x32xf32, #tpu.memory_space<vmem>>, vector<32x32xf32>
    %cst_49 = arith.constant dense<0.000000e+00> : vector<16x32xf32>
    %133 = tpu.matmul %131, %132, %cst_49 {dimension_numbers = #tpu.dot_dimension_numbers<[1], [0], [0], [1], [0, 0, 1, 1], [], []>} : vector<16x32xf32>, vector<32x32xf32>, vector<16x32xf32> -> vector<16x32xf32>
    %c1_50 = arith.constant 1 : index
    %c0_51 = arith.constant 0 : index
    %134 = vector.load %arg6[%c1_50, %c0_51] : memref<2x32xf32, #tpu.memory_space<vmem>>, vector<1x32xf32>
    %135 = vector.broadcast %134 : vector<1x32xf32> to vector<16x32xf32>
    %136 = arith.addf %133, %135 : vector<16x32xf32>
    %137 = arith.addf %136, %113 : vector<16x32xf32>
    %c0_52 = arith.constant 0 : index
    %c0_53 = arith.constant 0 : index
    %138 = vector.load %arg7[%c0_52, %c0_53] : memref<16x32xf32, #tpu.memory_space<vmem>>, vector<16x32xf32>
    tpu.vector_store %arg7[%c0_52, %c0_53], %137 {strides = array<i32>} : memref<16x32xf32, #tpu.memory_space<vmem>>, vector<16x32xf32>,
    return
  }
}

</mosaic_0001>

<llo_original>
// kernel: tpu_custom_call.1
$region0: #{tpu_custom_call.1}
  #allocation0 [shape = 'u32[]', space=smem, size = 0x4, offset = 0x4, fixed_abs, tag = 'smem constant byte address 0x4 - core index']
  #allocation1 [shape = 'u32[144,128]{1,0:T(1,128)}', space=vmem, size = 0x12000, scoped, tag = 'internal scratch']
  %s0 = inlined_call_operand.vmem [shape: f32[16,32], index: 0, kind: input, shape index: {}]
  %s1 = inlined_call_operand.vmem [shape: f32[16,16], index: 1, kind: input, shape index: {}]
  %s2 = inlined_call_operand.vmem [shape: f32[16,24], index: 2, kind: input, shape index: {}]
  %s3 = inlined_call_operand.vmem [shape: f32[72,64], index: 3, kind: input, shape index: {}]
  %s4 = inlined_call_operand.vmem [shape: f32[96,32], index: 4, kind: input, shape index: {}]
  %s5 = inlined_call_operand.vmem [shape: f32[3,64], index: 5, kind: input, shape index: {}]
  %s6 = inlined_call_operand.vmem [shape: f32[2,32], index: 6, kind: input, shape index: {}]
  %s7 = inlined_call_operand.hbm [shape: f32[16,32], index: 7, kind: output, shape index: {}]
  %s8 = sld [smem:[#allocation0]]
  $region38: #{tpu_custom_call.1} parent=0
    _
  %s10 = ssub.s32 1, %s8
  %s11 = scalar_select 0, %s10, %s8
  $region1: #{tpu_custom_call.1} parent=0
    #allocation2 [shape = 'u8[8192]{0}', space=vmem, size = 0x2000, scoped, tag = 'output window, operand 0, single buffered']
    #allocation3 [shape = 's32[1]{0}', space=sflag, size = 0x4, scoped, tag = 'scoped memory for tpu_custom_call.1']
    %12 = vsyncpa [#allocation3], 0
    // Predicated region
    $region2: #{tpu_custom_call.1} parent=1 // pred_check
      _
    $region3: #{tpu_custom_call.1} parent=1 // pred_check_branch
      %14 = sbr.rel (0) target = $region5
    $region4: #{tpu_custom_call.1} parent=1 // pred_region
      _
    $region5: #{tpu_custom_call.1} parent=1 // pred_fallthru
      _
    // Predicated region
    $region6: #{tpu_custom_call.1} parent=1 // pred_check
      _
    $region7: #{tpu_custom_call.1} parent=1 // pred_check_branch
      %16 = sbr.rel (0) target = $region9
    $region8: #{tpu_custom_call.1} parent=1 // pred_region
      _
    $region9: #{tpu_custom_call.1} parent=1 // pred_fallthru
      _
    // Predicated region
    $region10: #{tpu_custom_call.1} parent=1 // pred_check
      _
    $region11: #{tpu_custom_call.1} parent=1 // pred_check_branch
      %18 = sbr.rel (0) target = $region13
    $region12: #{tpu_custom_call.1} parent=1 // pred_region
      _
    $region13: #{tpu_custom_call.1} parent=1 // pred_fallthru
      _
    // Predicated region
    $region14: #{tpu_custom_call.1} parent=1 // pred_check
      _
    $region15: #{tpu_custom_call.1} parent=1 // pred_check_branch
      %20 = sbr.rel (0) target = $region17
    $region16: #{tpu_custom_call.1} parent=1 // pred_region
      _
    $region17: #{tpu_custom_call.1} parent=1 // pred_fallthru
      _
    // Predicated region
    $region18: #{tpu_custom_call.1} parent=1 // pred_check
      _
    $region19: #{tpu_custom_call.1} parent=1 // pred_check_branch
      %22 = sbr.rel (0) target = $region21
    $region20: #{tpu_custom_call.1} parent=1 // pred_region
      _
    $region21: #{tpu_custom_call.1} parent=1 // pred_fallthru
      _
    // Predicated region
    $region22: #{tpu_custom_call.1} parent=1 // pred_check
      _
    $region23: #{tpu_custom_call.1} parent=1 // pred_check_branch
      %24 = sbr.rel (0) target = $region25
    $region24: #{tpu_custom_call.1} parent=1 // pred_region
      _
    $region25: #{tpu_custom_call.1} parent=1 // pred_fallthru
      _
    // Predicated region
    $region26: #{tpu_custom_call.1} parent=1 // pred_check
      _
    $region27: #{tpu_custom_call.1} parent=1 // pred_check_branch
      %26 = sbr.rel (0) target = $region29
    $region28: #{tpu_custom_call.1} parent=1 // pred_region
      _
    $region29: #{tpu_custom_call.1} parent=1 // pred_fallthru
      _
    %v27 = vld [vmem:[%s0] sm:$0xff]
    %v28 = vld [vmem:[%s0 + $0x8] sm:$0xff]
    %vm29 = vcmask 261120
    %v30 = vsel %vm29, %v27, 0.0
    %31 = vadd.xlane.f32.xlu0 %v30
    %v32 = vpop.xlane.xlu0 %31
    %v33 = vsel %vm29, %v28, 0.0
    %34 = vadd.xlane.f32.xlu0 %v33
    %v35 = vpop.xlane.xlu0 %34
    %v36 = vrcp.pop 32.0
    %v37 = vmul.f32 %v32, %v36
    %v38 = vmul.f32 %v35, %v36
    %v39 = vsub.f32 %v27, %v37
    %v40 = vsub.f32 %v28, %v38
    %v41 = vmul.f32 %v39, %v39
    %v42 = vmul.f32 %v40, %v40
    %v43 = vsel %vm29, %v41, 0.0
    %44 = vadd.xlane.f32.xlu0 %v43
    %v45 = vpop.xlane.xlu0 %44
    %v46 = vsel %vm29, %v42, 0.0
    %47 = vadd.xlane.f32.xlu0 %v46
    %v48 = vpop.xlane.xlu0 %47
    %v49 = vmul.f32 %v45, %v36
    %v50 = vmul.f32 %v48, %v36
    %v51 = vadd.f32 %v49, 1e-05
    %v52 = vadd.f32 %v50, 1e-05
    %v53 = vrsqrt.pop %v51
    %v54 = vrsqrt.pop %v52
    %v55 = vmul.f32 %v39, %v53
    %v56 = vmul.f32 %v40, %v54
    %v57 = vld [vmem:[%s3] sm:$0xff]
    %v58 = vld [vmem:[%s3 + $0x8] sm:$0xff]
    %v59 = vld [vmem:[%s3 + $0x10] sm:$0xff]
    %v60 = vld [vmem:[%s3 + $0x18] sm:$0xff]
    %v61 = vld [vmem:[%s5] sm:$0x1]
    %v62 = vlaneseq
    %v63 = vshrl.u32 %v62, 7
    %v64 = vsub.s32 0, %v63
    %v65 = vrot.slane %v61, %v64
    %v67 = vsel %vm29, %v55, 0
    %v70 = vsel %vm29, %v56, 0
    %72 = vmatprep.subr.mxu0 0.0
    %73 = vmatpush1.msra.mxu0 0.0
    %74 = vmatprep.subr.mxu0 0.0
    %75 = vmatpush1.msra.mxu0 0.0
    %76 = vmatprep.subr.mxu0 0.0
    %77 = vmatpush1.msra.mxu0 0.0
    %78 = vmatprep.subr.mxu0 0.0
    %79 = vmatpush1.msra.mxu0 0.0
    %80 = vmatprep.subr.mxu0 0.0
    %81 = vmatpush1.msra.mxu0 0.0
    %82 = vmatprep.subr.mxu0 0.0
    %83 = vmatpush1.msra.mxu0 0.0
    %84 = vmatprep.subr.mxu0 0.0
    %85 = vmatpush1.msra.mxu0 0.0
    %86 = vmatprep.subr.mxu0 0.0
    %87 = vmatpush1.msra.mxu0 0.0
    %88 = vmatprep.subr.mxu0 0.0
    %89 = vmatpush1.msra.mxu0 0.0
    %90 = vmatprep.subr.mxu0 0.0
    %91 = vmatpush1.msra.mxu0 0.0
    %92 = vmatprep.subr.mxu0 0.0
    %93 = vmatpush1.msra.mxu0 0.0
    %94 = vmatprep.subr.mxu0 0.0
    %95 = vmatpush1.msra.mxu0 0.0
    %96 = vmatprep.subr.mxu0 0.0
    %97 = vmatpush1.msra.mxu0 %v60
    %98 = vmatprep.subr.mxu0 0.0
    %99 = vmatpush1.msra.mxu0 %v59
    %100 = vmatprep.subr.mxu0 0.0
    %101 = vmatpush1.msra.mxu0 %v58
    %102 = vmatprep.subr.mxu0 0.0
    %103 = vmatpush1.msra.mxu0 %v57
    %104 = vmatprep.subr.mxu0 0.0
    %105 = vmatpush2.msra.mxu0 0.0
    %106 = vmatprep.subr.mxu0 0.0
    %107 = vmatpush2.msra.mxu0 0.0
    %108 = vmatprep.subr.mxu0 0.0
    %109 = vmatpush2.msra.mxu0 0.0
    %110 = vmatprep.subr.mxu0 0.0
    %111 = vmatpush2.msra.mxu0 0.0
    %112 = vmatprep.subr.mxu0 0.0
    %113 = vmatpush2.msra.mxu0 0.0
    %114 = vmatprep.subr.mxu0 0.0
    %115 = vmatpush2.msra.mxu0 0.0
    %116 = vmatprep.subr.mxu0 0.0
    %117 = vmatpush2.msra.mxu0 0.0
    %118 = vmatprep.subr.mxu0 0.0
    %119 = vmatpush2.msra.mxu0 0.0
    %120 = vmatprep.subr.mxu0 0.0
    %121 = vmatpush2.msra.mxu0 0.0
    %122 = vmatprep.subr.mxu0 0.0
    %123 = vmatpush2.msra.mxu0 0.0
    %124 = vmatprep.subr.mxu0 0.0
    %125 = vmatpush2.msra.mxu0 0.0
    %126 = vmatprep.subr.mxu0 0.0
    %127 = vmatpush2.msra.mxu0 0.0
    %128 = vmatprep.subr.mxu0 0.0
    %129 = vmatpush2.msra.mxu0 0.0
    %130 = vmatprep.subr.mxu0 0.0
    %131 = vmatpush2.msra.mxu0 0.0
    %132 = vmatprep.subr.mxu0 0.0
    %133 = vmatpush2.msra.mxu0 0.0
    %134 = vmatprep.subr.mxu0 0.0
    %135 = vmatpush2.msra.mxu0 0.0
    %136 = vmatprep.mubr.f32.mxu0 0.0
    %137 = vmatmul.mubr.f32.gmra.mxu0 %v67
    %v138 = vpop.f32.mrf.mxu0
    %v139 = vadd.f32 %v65, %v138
    %v140 = vpop.f32.mrf.mxu0
    %141 = vmatprep.mubr.f32.mxu0 0.0
    %142 = vmatmul.mubr.f32.gmra.mxu0 %v70
    %v143 = vpop.f32.mrf.mxu0
    %v144 = vadd.f32 %v65, %v143
    %v145 = vpop.f32.mrf.mxu0
    %146 = vdwg.mxu0
    %v147 = vld [vmem:[%s1] sm:$0xff]
    %v148 = vld [vmem:[%s1 + $0x8] sm:$0xff]
    %vm149 = vcmask 130048
    %v150 = vsel %vm149, %v147, 0.0
    %151 = vadd.xlane.f32.xlu0 %v150
    %v152 = vpop.xlane.xlu0 %151
    %v153 = vsel %vm149, %v148, 0.0
    %154 = vadd.xlane.f32.xlu0 %v153
    %v155 = vpop.xlane.xlu0 %154
    %v156 = vrcp.pop 16.0
    %v157 = vmul.f32 %v152, %v156
    %v158 = vmul.f32 %v155, %v156
    %v159 = vsub.f32 %v147, %v157
    %v160 = vsub.f32 %v148, %v158
    %v161 = vmul.f32 %v159, %v159
    %v162 = vmul.f32 %v160, %v160
    %v163 = vsel %vm149, %v161, 0.0
    %164 = vadd.xlane.f32.xlu0 %v163
    %v165 = vpop.xlane.xlu0 %164
    %v166 = vsel %vm149, %v162, 0.0
    %167 = vadd.xlane.f32.xlu0 %v166
    %v168 = vpop.xlane.xlu0 %167
    %v169 = vmul.f32 %v165, %v156
    %v170 = vmul.f32 %v168, %v156
    %v171 = vadd.f32 %v169, 1e-05
    %v172 = vadd.f32 %v170, 1e-05
    %v173 = vrsqrt.pop %v171
    %v174 = vrsqrt.pop %v172
    %v175 = vmul.f32 %v159, %v173
    %v176 = vmul.f32 %v160, %v174
    %v177 = vld [vmem:[%s3 + $0x20] sm:$0xff]
    %v178 = vld [vmem:[%s3 + $0x28] sm:$0xff]
    %v179 = vld [vmem:[%s5 + $0x1] sm:$0x1]
    %v180 = vlaneseq
    %v181 = vshrl.u32 %v180, 7
    %v182 = vsub.s32 0, %v181
    %v183 = vrot.slane %v179, %v182
    %v185 = vsel %vm149, %v175, 0
    %v188 = vsel %vm149, %v176, 0
    %190 = vmatprep.subr.mxu0 0.0
    %191 = vmatpush1.msra.mxu0 0.0
    %192 = vmatprep.subr.mxu0 0.0
    %193 = vmatpush1.msra.mxu0 0.0
    %194 = vmatprep.subr.mxu0 0.0
    %195 = vmatpush1.msra.mxu0 0.0
    %196 = vmatprep.subr.mxu0 0.0
    %197 = vmatpush1.msra.mxu0 0.0
    %198 = vmatprep.subr.mxu0 0.0
    %199 = vmatpush1.msra.mxu0 0.0
    %200 = vmatprep.subr.mxu0 0.0
    %201 = vmatpush1.msra.mxu0 0.0
    %202 = vmatprep.subr.mxu0 0.0
    %203 = vmatpush1.msra.mxu0 0.0
    %204 = vmatprep.subr.mxu0 0.0
    %205 = vmatpush1.msra.mxu0 0.0
    %206 = vmatprep.subr.mxu0 0.0
    %207 = vmatpush1.msra.mxu0 0.0
    %208 = vmatprep.subr.mxu0 0.0
    %209 = vmatpush1.msra.mxu0 0.0
    %210 = vmatprep.subr.mxu0 0.0
    %211 = vmatpush1.msra.mxu0 0.0
    %212 = vmatprep.subr.mxu0 0.0
    %213 = vmatpush1.msra.mxu0 0.0
    %214 = vmatprep.subr.mxu0 0.0
    %215 = vmatpush1.msra.mxu0 0.0
    %216 = vmatprep.subr.mxu0 0.0
    %217 = vmatpush1.msra.mxu0 0.0
    %218 = vmatprep.subr.mxu0 0.0
    %219 = vmatpush1.msra.mxu0 %v178
    %220 = vmatprep.subr.mxu0 0.0
    %221 = vmatpush1.msra.mxu0 %v177
    %222 = vmatprep.subr.mxu0 0.0
    %223 = vmatpush2.msra.mxu0 0.0
    %224 = vmatprep.subr.mxu0 0.0
    %225 = vmatpush2.msra.mxu0 0.0
    %226 = vmatprep.subr.mxu0 0.0
    %227 = vmatpush2.msra.mxu0 0.0
    %228 = vmatprep.subr.mxu0 0.0
    %229 = vmatpush2.msra.mxu0 0.0
    %230 = vmatprep.subr.mxu0 0.0
    %231 = vmatpush2.msra.mxu0 0.0
    %232 = vmatprep.subr.mxu0 0.0
    %233 = vmatpush2.msra.mxu0 0.0
    %234 = vmatprep.subr.mxu0 0.0
    %235 = vmatpush2.msra.mxu0 0.0
    %236 = vmatprep.subr.mxu0 0.0
    %237 = vmatpush2.msra.mxu0 0.0
    %238 = vmatprep.subr.mxu0 0.0
    %239 = vmatpush2.msra.mxu0 0.0
    %240 = vmatprep.subr.mxu0 0.0
    %241 = vmatpush2.msra.mxu0 0.0
    %242 = vmatprep.subr.mxu0 0.0
    %243 = vmatpush2.msra.mxu0 0.0
    %244 = vmatprep.subr.mxu0 0.0
    %245 = vmatpush2.msra.mxu0 0.0
    %246 = vmatprep.subr.mxu0 0.0
    %247 = vmatpush2.msra.mxu0 0.0
    %248 = vmatprep.subr.mxu0 0.0
    %249 = vmatpush2.msra.mxu0 0.0
    %250 = vmatprep.subr.mxu0 0.0
    %251 = vmatpush2.msra.mxu0 0.0
    %252 = vmatprep.subr.mxu0 0.0
    %253 = vmatpush2.msra.mxu0 0.0
    %254 = vmatprep.mubr.f32.mxu0 0.0
    %255 = vmatmul.mubr.f32.gmra.mxu0 %v185
    %v256 = vpop.f32.mrf.mxu0
    %v257 = vadd.f32 %v183, %v256
    %v258 = vpop.f32.mrf.mxu0
    %259 = vmatprep.mubr.f32.mxu0 0.0
    %260 = vmatmul.mubr.f32.gmra.mxu0 %v188
    %v261 = vpop.f32.mrf.mxu0
    %v262 = vadd.f32 %v183, %v261
    %v263 = vpop.f32.mrf.mxu0
    %264 = vdwg.mxu0
    %v265 = vld [vmem:[%s2] sm:$0xff]
    %v266 = vld [vmem:[%s2 + $0x8] sm:$0xff]
    %vm267 = vcmask 195584
    %v268 = vsel %vm267, %v265, 0.0
    %269 = vadd.xlane.f32.xlu0 %v268
    %v270 = vpop.xlane.xlu0 %269
    %v271 = vsel %vm267, %v266, 0.0
    %272 = vadd.xlane.f32.xlu0 %v271
    %v273 = vpop.xlane.xlu0 %272
    %v274 = vrcp.pop 24.0
    %v275 = vmul.f32 %v270, %v274
    %v276 = vmul.f32 %v273, %v274
    %v277 = vsub.f32 %v265, %v275
    %v278 = vsub.f32 %v266, %v276
    %v279 = vmul.f32 %v277, %v277
    %v280 = vmul.f32 %v278, %v278
    %v281 = vsel %vm267, %v279, 0.0
    %282 = vadd.xlane.f32.xlu0 %v281
    %v283 = vpop.xlane.xlu0 %282
    %v284 = vsel %vm267, %v280, 0.0
    %285 = vadd.xlane.f32.xlu0 %v284
    %v286 = vpop.xlane.xlu0 %285
    %v287 = vmul.f32 %v283, %v274
    %v288 = vmul.f32 %v286, %v274
    %v289 = vadd.f32 %v287, 1e-05
    %v290 = vadd.f32 %v288, 1e-05
    %v291 = vrsqrt.pop %v289
    %v292 = vrsqrt.pop %v290
    %v293 = vmul.f32 %v277, %v291
    %v294 = vmul.f32 %v278, %v292
    %v295 = vld [vmem:[%s3 + $0x30] sm:$0xff]
    %v296 = vld [vmem:[%s3 + $0x38] sm:$0xff]
    %v297 = vld [vmem:[%s3 + $0x40] sm:$0xff]
    %v298 = vld [vmem:[%s5 + $0x2] sm:$0x1]
    %v299 = vlaneseq
    %v300 = vshrl.u32 %v299, 7
    %v301 = vsub.s32 0, %v300
    %v302 = vrot.slane %v298, %v301
    %v304 = vsel %vm267, %v293, 0
    %v307 = vsel %vm267, %v294, 0
    %309 = vmatprep.subr.mxu0 0.0
    %310 = vmatpush1.msra.mxu0 0.0
    %311 = vmatprep.subr.mxu0 0.0
    %312 = vmatpush1.msra.mxu0 0.0
    %313 = vmatprep.subr.mxu0 0.0
    %314 = vmatpush1.msra.mxu0 0.0
    %315 = vmatprep.subr.mxu0 0.0
    %316 = vmatpush1.msra.mxu0 0.0
    %317 = vmatprep.subr.mxu0 0.0
    %318 = vmatpush1.msra.mxu0 0.0
    %319 = vmatprep.subr.mxu0 0.0
    %320 = vmatpush1.msra.mxu0 0.0
    %321 = vmatprep.subr.mxu0 0.0
    %322 = vmatpush1.msra.mxu0 0.0
    %323 = vmatprep.subr.mxu0 0.0
    %324 = vmatpush1.msra.mxu0 0.0
    %325 = vmatprep.subr.mxu0 0.0
    %326 = vmatpush1.msra.mxu0 0.0
    %327 = vmatprep.subr.mxu0 0.0
    %328 = vmatpush1.msra.mxu0 0.0
    %329 = vmatprep.subr.mxu0 0.0
    %330 = vmatpush1.msra.mxu0 0.0
    %331 = vmatprep.subr.mxu0 0.0
    %332 = vmatpush1.msra.mxu0 0.0
    %333 = vmatprep.subr.mxu0 0.0
    %334 = vmatpush1.msra.mxu0 0.0
    %335 = vmatprep.subr.mxu0 0.0
    %336 = vmatpush1.msra.mxu0 %v297
    %337 = vmatprep.subr.mxu0 0.0
    %338 = vmatpush1.msra.mxu0 %v296
    %339 = vmatprep.subr.mxu0 0.0
    %340 = vmatpush1.msra.mxu0 %v295
    %341 = vmatprep.subr.mxu0 0.0
    %342 = vmatpush2.msra.mxu0 0.0
    %343 = vmatprep.subr.mxu0 0.0
    %344 = vmatpush2.msra.mxu0 0.0
    %345 = vmatprep.subr.mxu0 0.0
    %346 = vmatpush2.msra.mxu0 0.0
    %347 = vmatprep.subr.mxu0 0.0
    %348 = vmatpush2.msra.mxu0 0.0
    %349 = vmatprep.subr.mxu0 0.0
    %350 = vmatpush2.msra.mxu0 0.0
    %351 = vmatprep.subr.mxu0 0.0
    %352 = vmatpush2.msra.mxu0 0.0
    %353 = vmatprep.subr.mxu0 0.0
    %354 = vmatpush2.msra.mxu0 0.0
    %355 = vmatprep.subr.mxu0 0.0
    %356 = vmatpush2.msra.mxu0 0.0
    %357 = vmatprep.subr.mxu0 0.0
    %358 = vmatpush2.msra.mxu0 0.0
    %359 = vmatprep.subr.mxu0 0.0
    %360 = vmatpush2.msra.mxu0 0.0
    %361 = vmatprep.subr.mxu0 0.0
    %362 = vmatpush2.msra.mxu0 0.0
    %363 = vmatprep.subr.mxu0 0.0
    %364 = vmatpush2.msra.mxu0 0.0
    %365 = vmatprep.subr.mxu0 0.0
    %366 = vmatpush2.msra.mxu0 0.0
    %367 = vmatprep.subr.mxu0 0.0
    %368 = vmatpush2.msra.mxu0 0.0
    %369 = vmatprep.subr.mxu0 0.0
    %370 = vmatpush2.msra.mxu0 0.0
    %371 = vmatprep.subr.mxu0 0.0
    %372 = vmatpush2.msra.mxu0 0.0
    %373 = vmatprep.mubr.f32.mxu0 0.0
    %374 = vmatmul.mubr.f32.gmra.mxu0 %v304
    %v375 = vpop.f32.mrf.mxu0
    %v376 = vadd.f32 %v302, %v375
    %v377 = vpop.f32.mrf.mxu0
    %378 = vmatprep.mubr.f32.mxu0 0.0
    %379 = vmatmul.mubr.f32.gmra.mxu0 %v307
    %v380 = vpop.f32.mrf.mxu0
    %v381 = vadd.f32 %v302, %v380
    %v382 = vpop.f32.mrf.mxu0
    %383 = vdwg.mxu0
    %v385 = vsel %vm29, %v139, 0
    %v388 = vsel %vm29, %v257, 0
    %390 = vmatprep.subr.mxu0 0.0
    %391 = vmatpush1.xpose.msra.mxu0 0.0
    %392 = vmatprep.subr.mxu0 0.0
    %393 = vmatpush1.xpose.msra.mxu0 0.0
    %394 = vmatprep.subr.mxu0 0.0
    %395 = vmatpush1.xpose.msra.mxu0 0.0
    %396 = vmatprep.subr.mxu0 0.0
    %397 = vmatpush1.xpose.msra.mxu0 0.0
    %398 = vmatprep.subr.mxu0 0.0
    %399 = vmatpush1.xpose.msra.mxu0 0.0
    %400 = vmatprep.subr.mxu0 0.0
    %401 = vmatpush1.xpose.msra.mxu0 0.0
    %402 = vmatprep.subr.mxu0 0.0
    %403 = vmatpush1.xpose.msra.mxu0 0.0
    %404 = vmatprep.subr.mxu0 0.0
    %405 = vmatpush1.xpose.msra.mxu0 0.0
    %406 = vmatprep.subr.mxu0 0.0
    %407 = vmatpush1.xpose.msra.mxu0 0.0
    %408 = vmatprep.subr.mxu0 0.0
    %409 = vmatpush1.xpose.msra.mxu0 0.0
    %410 = vmatprep.subr.mxu0 0.0
    %411 = vmatpush1.xpose.msra.mxu0 0.0
    %412 = vmatprep.subr.mxu0 0.0
    %413 = vmatpush1.xpose.msra.mxu0 0.0
    %414 = vmatprep.subr.mxu0 0.0
    %415 = vmatpush1.xpose.msra.mxu0 0.0
    %416 = vmatprep.subr.mxu0 0.0
    %417 = vmatpush1.xpose.msra.mxu0 0.0
    %418 = vmatprep.subr.mxu0 0.0
    %419 = vmatpush1.xpose.msra.mxu0 0.0
    %420 = vmatprep.subr.mxu0 0.0
    %421 = vmatpush1.xpose.msra.mxu0 %v388
    %422 = vmatprep.subr.mxu0 0.0
    %423 = vmatpush2.xpose.msra.mxu0 0.0
    %424 = vmatprep.subr.mxu0 0.0
    %425 = vmatpush2.xpose.msra.mxu0 0.0
    %426 = vmatprep.subr.mxu0 0.0
    %427 = vmatpush2.xpose.msra.mxu0 0.0
    %428 = vmatprep.subr.mxu0 0.0
    %429 = vmatpush2.xpose.msra.mxu0 0.0
    %430 = vmatprep.subr.mxu0 0.0
    %431 = vmatpush2.xpose.msra.mxu0 0.0
    %432 = vmatprep.subr.mxu0 0.0
    %433 = vmatpush2.xpose.msra.mxu0 0.0
    %434 = vmatprep.subr.mxu0 0.0
    %435 = vmatpush2.xpose.msra.mxu0 0.0
    %436 = vmatprep.subr.mxu0 0.0
    %437 = vmatpush2.xpose.msra.mxu0 0.0
    %438 = vmatprep.subr.mxu0 0.0
    %439 = vmatpush2.xpose.msra.mxu0 0.0
    %440 = vmatprep.subr.mxu0 0.0
    %441 = vmatpush2.xpose.msra.mxu0 0.0
    %442 = vmatprep.subr.mxu0 0.0
    %443 = vmatpush2.xpose.msra.mxu0 0.0
    %444 = vmatprep.subr.mxu0 0.0
    %445 = vmatpush2.xpose.msra.mxu0 0.0
    %446 = vmatprep.subr.mxu0 0.0
    %447 = vmatpush2.xpose.msra.mxu0 0.0
    %448 = vmatprep.subr.mxu0 0.0
    %449 = vmatpush2.xpose.msra.mxu0 0.0
    %450 = vmatprep.subr.mxu0 0.0
    %451 = vmatpush2.xpose.msra.mxu0 0.0
    %452 = vmatprep.subr.mxu0 0.0
    %453 = vmatpush2.xpose.msra.mxu0 0.0
    %454 = vmatprep.mubr.f32.mxu0 0.0
    %455 = vmatmul.mubr.f32.gmra.mxu0 %v385
    %v456 = vpop.f32.mrf.mxu0
    %v457 = vadd.f32 0.0, %v456
    %v458 = vpop.f32.mrf.mxu0
    %459 = vdwg.mxu0
    %v461 = vsel %vm29, %v144, 0
    %v464 = vsel %vm29, %v262, 0
    %466 = vmatprep.subr.mxu0 0.0
    %467 = vmatpush1.xpose.msra.mxu0 0.0
    %468 = vmatprep.subr.mxu0 0.0
    %469 = vmatpush1.xpose.msra.mxu0 0.0
    %470 = vmatprep.subr.mxu0 0.0
    %471 = vmatpush1.xpose.msra.mxu0 0.0
    %472 = vmatprep.subr.mxu0 0.0
    %473 = vmatpush1.xpose.msra.mxu0 0.0
    %474 = vmatprep.subr.mxu0 0.0
    %475 = vmatpush1.xpose.msra.mxu0 0.0
    %476 = vmatprep.subr.mxu0 0.0
    %477 = vmatpush1.xpose.msra.mxu0 0.0
    %478 = vmatprep.subr.mxu0 0.0
    %479 = vmatpush1.xpose.msra.mxu0 0.0
    %480 = vmatprep.subr.mxu0 0.0
    %481 = vmatpush1.xpose.msra.mxu0 0.0
    %482 = vmatprep.subr.mxu0 0.0
    %483 = vmatpush1.xpose.msra.mxu0 0.0
    %484 = vmatprep.subr.mxu0 0.0
    %485 = vmatpush1.xpose.msra.mxu0 0.0
    %486 = vmatprep.subr.mxu0 0.0
    %487 = vmatpush1.xpose.msra.mxu0 0.0
    %488 = vmatprep.subr.mxu0 0.0
    %489 = vmatpush1.xpose.msra.mxu0 0.0
    %490 = vmatprep.subr.mxu0 0.0
    %491 = vmatpush1.xpose.msra.mxu0 0.0
    %492 = vmatprep.subr.mxu0 0.0
    %493 = vmatpush1.xpose.msra.mxu0 0.0
    %494 = vmatprep.subr.mxu0 0.0
    %495 = vmatpush1.xpose.msra.mxu0 0.0
    %496 = vmatprep.subr.mxu0 0.0
    %497 = vmatpush1.xpose.msra.mxu0 %v464
    %498 = vmatprep.subr.mxu0 0.0
    %499 = vmatpush2.xpose.msra.mxu0 0.0
    %500 = vmatprep.subr.mxu0 0.0
    %501 = vmatpush2.xpose.msra.mxu0 0.0
    %502 = vmatprep.subr.mxu0 0.0
    %503 = vmatpush2.xpose.msra.mxu0 0.0
    %504 = vmatprep.subr.mxu0 0.0
    %505 = vmatpush2.xpose.msra.mxu0 0.0
    %506 = vmatprep.subr.mxu0 0.0
    %507 = vmatpush2.xpose.msra.mxu0 0.0
    %508 = vmatprep.subr.mxu0 0.0
    %509 = vmatpush2.xpose.msra.mxu0 0.0
    %510 = vmatprep.subr.mxu0 0.0
    %511 = vmatpush2.xpose.msra.mxu0 0.0
    %512 = vmatprep.subr.mxu0 0.0
    %513 = vmatpush2.xpose.msra.mxu0 0.0
    %514 = vmatprep.subr.mxu0 0.0
    %515 = vmatpush2.xpose.msra.mxu0 0.0
    %516 = vmatprep.subr.mxu0 0.0
    %517 = vmatpush2.xpose.msra.mxu0 0.0
    %518 = vmatprep.subr.mxu0 0.0
    %519 = vmatpush2.xpose.msra.mxu0 0.0
    %520 = vmatprep.subr.mxu0 0.0
    %521 = vmatpush2.xpose.msra.mxu0 0.0
    %522 = vmatprep.subr.mxu0 0.0
    %523 = vmatpush2.xpose.msra.mxu0 0.0
    %524 = vmatprep.subr.mxu0 0.0
    %525 = vmatpush2.xpose.msra.mxu0 0.0
    %526 = vmatprep.subr.mxu0 0.0
    %527 = vmatpush2.xpose.msra.mxu0 0.0
    %528 = vmatprep.subr.mxu0 0.0
    %529 = vmatpush2.xpose.msra.mxu0 0.0
    %530 = vmatprep.mubr.f32.mxu0 0.0
    %531 = vmatmul.mubr.f32.gmra.mxu0 %v461
    %v532 = vpop.f32.mrf.mxu0
    %v533 = vadd.f32 0.0, %v532
    %v534 = vpop.f32.mrf.mxu0
    %535 = vdwg.mxu0
    %vm536 = vcmask 64512
    %v537 = vsel %vm536, %v457, -inf
    %538 = vmax.xlane.f32.xlu0 %v537
    %v539 = vpop.xlane.xlu0 %538
    %v540 = vsel %vm536, %v533, -inf
    %541 = vmax.xlane.f32.xlu0 %v540
    %v542 = vpop.xlane.xlu0 %541
    %v543 = vsub.f32 %v457, %v539
    %v544 = vsub.f32 %v533, %v542
    %v545 = vmul.f32 %v543, 1.442695
    %v546 = vpow.pop %v545
    %v547 = vmul.f32 %v544, 1.442695
    %v548 = vpow.pop %v547
    %v549 = vsel %vm536, %v546, 0.0
    %550 = vadd.xlane.f32.xlu0 %v549
    %v551 = vpop.xlane.xlu0 %550
    %v552 = vsel %vm536, %v548, 0.0
    %553 = vadd.xlane.f32.xlu0 %v552
    %v554 = vpop.xlane.xlu0 %553
    %v555 = vrcp.pop %v551
    %v556 = vrcp.pop %v554
    %v557 = vmul.f32 %v546, %v555
    %v558 = vmul.f32 %v548, %v556
    %559 = vrot.lane.b32.xlu0 %v257, 96
    %v560 = vpop.permute.xlu0 %559
    %v563 = vsel %vm536, %v557, 0
    %565 = vmatprep.subr.mxu0 0.0
    %566 = vmatpush1.msra.mxu0 0.0
    %567 = vmatprep.subr.mxu0 0.0
    %568 = vmatpush1.msra.mxu0 0.0
    %569 = vmatprep.subr.mxu0 0.0
    %570 = vmatpush1.msra.mxu0 0.0
    %571 = vmatprep.subr.mxu0 0.0
    %572 = vmatpush1.msra.mxu0 0.0
    %573 = vmatprep.subr.mxu0 0.0
    %574 = vmatpush1.msra.mxu0 0.0
    %575 = vmatprep.subr.mxu0 0.0
    %576 = vmatpush1.msra.mxu0 0.0
    %577 = vmatprep.subr.mxu0 0.0
    %578 = vmatpush1.msra.mxu0 0.0
    %579 = vmatprep.subr.mxu0 0.0
    %580 = vmatpush1.msra.mxu0 0.0
    %581 = vmatprep.subr.mxu0 0.0
    %582 = vmatpush1.msra.mxu0 0.0
    %583 = vmatprep.subr.mxu0 0.0
    %584 = vmatpush1.msra.mxu0 0.0
    %585 = vmatprep.subr.mxu0 0.0
    %586 = vmatpush1.msra.mxu0 0.0
    %587 = vmatprep.subr.mxu0 0.0
    %588 = vmatpush1.msra.mxu0 0.0
    %589 = vmatprep.subr.mxu0 0.0
    %590 = vmatpush1.msra.mxu0 0.0
    %591 = vmatprep.subr.mxu0 0.0
    %592 = vmatpush1.msra.mxu0 0.0
    %593 = vmatprep.subr.mxu0 0.0
    %594 = vmatpush1.msra.mxu0 0.0
    %595 = vmatprep.subr.mxu0 0.0
    %596 = vmatpush1.msra.mxu0 %v560
    %597 = vmatprep.subr.mxu0 0.0
    %598 = vmatpush2.msra.mxu0 0.0
    %599 = vmatprep.subr.mxu0 0.0
    %600 = vmatpush2.msra.mxu0 0.0
    %601 = vmatprep.subr.mxu0 0.0
    %602 = vmatpush2.msra.mxu0 0.0
    %603 = vmatprep.subr.mxu0 0.0
    %604 = vmatpush2.msra.mxu0 0.0
    %605 = vmatprep.subr.mxu0 0.0
    %606 = vmatpush2.msra.mxu0 0.0
    %607 = vmatprep.subr.mxu0 0.0
    %608 = vmatpush2.msra.mxu0 0.0
    %609 = vmatprep.subr.mxu0 0.0
    %610 = vmatpush2.msra.mxu0 0.0
    %611 = vmatprep.subr.mxu0 0.0
    %612 = vmatpush2.msra.mxu0 0.0
    %613 = vmatprep.subr.mxu0 0.0
    %614 = vmatpush2.msra.mxu0 0.0
    %615 = vmatprep.subr.mxu0 0.0
    %616 = vmatpush2.msra.mxu0 0.0
    %617 = vmatprep.subr.mxu0 0.0
    %618 = vmatpush2.msra.mxu0 0.0
    %619 = vmatprep.subr.mxu0 0.0
    %620 = vmatpush2.msra.mxu0 0.0
    %621 = vmatprep.subr.mxu0 0.0
    %622 = vmatpush2.msra.mxu0 0.0
    %623 = vmatprep.subr.mxu0 0.0
    %624 = vmatpush2.msra.mxu0 0.0
    %625 = vmatprep.subr.mxu0 0.0
    %626 = vmatpush2.msra.mxu0 0.0
    %627 = vmatprep.subr.mxu0 0.0
    %628 = vmatpush2.msra.mxu0 0.0
    %629 = vmatprep.mubr.f32.mxu0 0.0
    %630 = vmatmul.mubr.f32.gmra.mxu0 %v563
    %v631 = vpop.f32.mrf.mxu0
    %v632 = vadd.f32 0.0, %v631
    %v633 = vpop.f32.mrf.mxu0
    %634 = vdwg.mxu0
    %635 = vrot.lane.b32.xlu0 %v262, 96
    %v636 = vpop.permute.xlu0 %635
    %v639 = vsel %vm536, %v558, 0
    %641 = vmatprep.subr.mxu0 0.0
    %642 = vmatpush1.msra.mxu0 0.0
    %643 = vmatprep.subr.mxu0 0.0
    %644 = vmatpush1.msra.mxu0 0.0
    %645 = vmatprep.subr.mxu0 0.0
    %646 = vmatpush1.msra.mxu0 0.0
    %647 = vmatprep.subr.mxu0 0.0
    %648 = vmatpush1.msra.mxu0 0.0
    %649 = vmatprep.subr.mxu0 0.0
    %650 = vmatpush1.msra.mxu0 0.0
    %651 = vmatprep.subr.mxu0 0.0
    %652 = vmatpush1.msra.mxu0 0.0
    %653 = vmatprep.subr.mxu0 0.0
    %654 = vmatpush1.msra.mxu0 0.0
    %655 = vmatprep.subr.mxu0 0.0
    %656 = vmatpush1.msra.mxu0 0.0
    %657 = vmatprep.subr.mxu0 0.0
    %658 = vmatpush1.msra.mxu0 0.0
    %659 = vmatprep.subr.mxu0 0.0
    %660 = vmatpush1.msra.mxu0 0.0
    %661 = vmatprep.subr.mxu0 0.0
    %662 = vmatpush1.msra.mxu0 0.0
    %663 = vmatprep.subr.mxu0 0.0
    %664 = vmatpush1.msra.mxu0 0.0
    %665 = vmatprep.subr.mxu0 0.0
    %666 = vmatpush1.msra.mxu0 0.0
    %667 = vmatprep.subr.mxu0 0.0
    %668 = vmatpush1.msra.mxu0 0.0
    %669 = vmatprep.subr.mxu0 0.0
    %670 = vmatpush1.msra.mxu0 0.0
    %671 = vmatprep.subr.mxu0 0.0
    %672 = vmatpush1.msra.mxu0 %v636
    %673 = vmatprep.subr.mxu0 0.0
    %674 = vmatpush2.msra.mxu0 0.0
    %675 = vmatprep.subr.mxu0 0.0
    %676 = vmatpush2.msra.mxu0 0.0
    %677 = vmatprep.subr.mxu0 0.0
    %678 = vmatpush2.msra.mxu0 0.0
    %679 = vmatprep.subr.mxu0 0.0
    %680 = vmatpush2.msra.mxu0 0.0
    %681 = vmatprep.subr.mxu0 0.0
    %682 = vmatpush2.msra.mxu0 0.0
    %683 = vmatprep.subr.mxu0 0.0
    %684 = vmatpush2.msra.mxu0 0.0
    %685 = vmatprep.subr.mxu0 0.0
    %686 = vmatpush2.msra.mxu0 0.0
    %687 = vmatprep.subr.mxu0 0.0
    %688 = vmatpush2.msra.mxu0 0.0
    %689 = vmatprep.subr.mxu0 0.0
    %690 = vmatpush2.msra.mxu0 0.0
    %691 = vmatprep.subr.mxu0 0.0
    %692 = vmatpush2.msra.mxu0 0.0
    %693 = vmatprep.subr.mxu0 0.0
    %694 = vmatpush2.msra.mxu0 0.0
    %695 = vmatprep.subr.mxu0 0.0
    %696 = vmatpush2.msra.mxu0 0.0
    %697 = vmatprep.subr.mxu0 0.0
    %698 = vmatpush2.msra.mxu0 0.0
    %699 = vmatprep.subr.mxu0 0.0
    %700 = vmatpush2.msra.mxu0 0.0
    %701 = vmatprep.subr.mxu0 0.0
    %702 = vmatpush2.msra.mxu0 0.0
    %703 = vmatprep.subr.mxu0 0.0
    %704 = vmatpush2.msra.mxu0 0.0
    %705 = vmatprep.mubr.f32.mxu0 0.0
    %706 = vmatmul.mubr.f32.gmra.mxu0 %v639
    %v707 = vpop.f32.mrf.mxu0
    %v708 = vadd.f32 0.0, %v707
    %v709 = vpop.f32.mrf.mxu0
    %710 = vdwg.mxu0
    %711 = vrot.lane.b32.xlu0 %v139, 96
    %v712 = vpop.permute.xlu0 %711
    %v713 = vsel %vm29, %v712, 0
    %v716 = vsel %vm29, %v376, 0
    %718 = vmatprep.subr.mxu0 0.0
    %719 = vmatpush1.xpose.msra.mxu0 0.0
    %720 = vmatprep.subr.mxu0 0.0
    %721 = vmatpush1.xpose.msra.mxu0 0.0
    %722 = vmatprep.subr.mxu0 0.0
    %723 = vmatpush1.xpose.msra.mxu0 0.0
    %724 = vmatprep.subr.mxu0 0.0
    %725 = vmatpush1.xpose.msra.mxu0 0.0
    %726 = vmatprep.subr.mxu0 0.0
    %727 = vmatpush1.xpose.msra.mxu0 0.0
    %728 = vmatprep.subr.mxu0 0.0
    %729 = vmatpush1.xpose.msra.mxu0 0.0
    %730 = vmatprep.subr.mxu0 0.0
    %731 = vmatpush1.xpose.msra.mxu0 0.0
    %732 = vmatprep.subr.mxu0 0.0
    %733 = vmatpush1.xpose.msra.mxu0 0.0
    %734 = vmatprep.subr.mxu0 0.0
    %735 = vmatpush1.xpose.msra.mxu0 0.0
    %736 = vmatprep.subr.mxu0 0.0
    %737 = vmatpush1.xpose.msra.mxu0 0.0
    %738 = vmatprep.subr.mxu0 0.0
    %739 = vmatpush1.xpose.msra.mxu0 0.0
    %740 = vmatprep.subr.mxu0 0.0
    %741 = vmatpush1.xpose.msra.mxu0 0.0
    %742 = vmatprep.subr.mxu0 0.0
    %743 = vmatpush1.xpose.msra.mxu0 0.0
    %744 = vmatprep.subr.mxu0 0.0
    %745 = vmatpush1.xpose.msra.mxu0 0.0
    %746 = vmatprep.subr.mxu0 0.0
    %747 = vmatpush1.xpose.msra.mxu0 0.0
    %748 = vmatprep.subr.mxu0 0.0
    %749 = vmatpush1.xpose.msra.mxu0 %v716
    %750 = vmatprep.subr.mxu0 0.0
    %751 = vmatpush2.xpose.msra.mxu0 0.0
    %752 = vmatprep.subr.mxu0 0.0
    %753 = vmatpush2.xpose.msra.mxu0 0.0
    %754 = vmatprep.subr.mxu0 0.0
    %755 = vmatpush2.xpose.msra.mxu0 0.0
    %756 = vmatprep.subr.mxu0 0.0
    %757 = vmatpush2.xpose.msra.mxu0 0.0
    %758 = vmatprep.subr.mxu0 0.0
    %759 = vmatpush2.xpose.msra.mxu0 0.0
    %760 = vmatprep.subr.mxu0 0.0
    %761 = vmatpush2.xpose.msra.mxu0 0.0
    %762 = vmatprep.subr.mxu0 0.0
    %763 = vmatpush2.xpose.msra.mxu0 0.0
    %764 = vmatprep.subr.mxu0 0.0
    %765 = vmatpush2.xpose.msra.mxu0 0.0
    %766 = vmatprep.subr.mxu0 0.0
    %767 = vmatpush2.xpose.msra.mxu0 0.0
    %768 = vmatprep.subr.mxu0 0.0
    %769 = vmatpush2.xpose.msra.mxu0 0.0
    %770 = vmatprep.subr.mxu0 0.0
    %771 = vmatpush2.xpose.msra.mxu0 0.0
    %772 = vmatprep.subr.mxu0 0.0
    %773 = vmatpush2.xpose.msra.mxu0 0.0
    %774 = vmatprep.subr.mxu0 0.0
    %775 = vmatpush2.xpose.msra.mxu0 0.0
    %776 = vmatprep.subr.mxu0 0.0
    %777 = vmatpush2.xpose.msra.mxu0 0.0
    %778 = vmatprep.subr.mxu0 0.0
    %779 = vmatpush2.xpose.msra.mxu0 0.0
    %780 = vmatprep.subr.mxu0 0.0
    %781 = vmatpush2.xpose.msra.mxu0 0.0
    %782 = vmatprep.mubr.f32.mxu0 0.0
    %783 = vmatmul.mubr.f32.gmra.mxu0 %v713
    %v784 = vpop.f32.mrf.mxu0
    %v785 = vadd.f32 0.0, %v784
    %v786 = vpop.f32.mrf.mxu0
    %787 = vdwg.mxu0
    %788 = vrot.lane.b32.xlu0 %v144, 96
    %v789 = vpop.permute.xlu0 %788
    %v790 = vsel %vm29, %v789, 0
    %v793 = vsel %vm29, %v381, 0
    %795 = vmatprep.subr.mxu0 0.0
    %796 = vmatpush1.xpose.msra.mxu0 0.0
    %797 = vmatprep.subr.mxu0 0.0
    %798 = vmatpush1.xpose.msra.mxu0 0.0
    %799 = vmatprep.subr.mxu0 0.0
    %800 = vmatpush1.xpose.msra.mxu0 0.0
    %801 = vmatprep.subr.mxu0 0.0
    %802 = vmatpush1.xpose.msra.mxu0 0.0
    %803 = vmatprep.subr.mxu0 0.0
    %804 = vmatpush1.xpose.msra.mxu0 0.0
    %805 = vmatprep.subr.mxu0 0.0
    %806 = vmatpush1.xpose.msra.mxu0 0.0
    %807 = vmatprep.subr.mxu0 0.0
    %808 = vmatpush1.xpose.msra.mxu0 0.0
    %809 = vmatprep.subr.mxu0 0.0
    %810 = vmatpush1.xpose.msra.mxu0 0.0
    %811 = vmatprep.subr.mxu0 0.0
    %812 = vmatpush1.xpose.msra.mxu0 0.0
    %813 = vmatprep.subr.mxu0 0.0
    %814 = vmatpush1.xpose.msra.mxu0 0.0
    %815 = vmatprep.subr.mxu0 0.0
    %816 = vmatpush1.xpose.msra.mxu0 0.0
    %817 = vmatprep.subr.mxu0 0.0
    %818 = vmatpush1.xpose.msra.mxu0 0.0
    %819 = vmatprep.subr.mxu0 0.0
    %820 = vmatpush1.xpose.msra.mxu0 0.0
    %821 = vmatprep.subr.mxu0 0.0
    %822 = vmatpush1.xpose.msra.mxu0 0.0
    %823 = vmatprep.subr.mxu0 0.0
    %824 = vmatpush1.xpose.msra.mxu0 0.0
    %825 = vmatprep.subr.mxu0 0.0
    %826 = vmatpush1.xpose.msra.mxu0 %v793
    %827 = vmatprep.subr.mxu0 0.0
    %828 = vmatpush2.xpose.msra.mxu0 0.0
    %829 = vmatprep.subr.mxu0 0.0
    %830 = vmatpush2.xpose.msra.mxu0 0.0
    %831 = vmatprep.subr.mxu0 0.0
    %832 = vmatpush2.xpose.msra.mxu0 0.0
    %833 = vmatprep.subr.mxu0 0.0
    %834 = vmatpush2.xpose.msra.mxu0 0.0
    %835 = vmatprep.subr.mxu0 0.0
    %836 = vmatpush2.xpose.msra.mxu0 0.0
    %837 = vmatprep.subr.mxu0 0.0
    %838 = vmatpush2.xpose.msra.mxu0 0.0
    %839 = vmatprep.subr.mxu0 0.0
    %840 = vmatpush2.xpose.msra.mxu0 0.0
    %841 = vmatprep.subr.mxu0 0.0
    %842 = vmatpush2.xpose.msra.mxu0 0.0
    %843 = vmatprep.subr.mxu0 0.0
    %844 = vmatpush2.xpose.msra.mxu0 0.0
    %845 = vmatprep.subr.mxu0 0.0
    %846 = vmatpush2.xpose.msra.mxu0 0.0
    %847 = vmatprep.subr.mxu0 0.0
    %848 = vmatpush2.xpose.msra.mxu0 0.0
    %849 = vmatprep.subr.mxu0 0.0
    %850 = vmatpush2.xpose.msra.mxu0 0.0
    %851 = vmatprep.subr.mxu0 0.0
    %852 = vmatpush2.xpose.msra.mxu0 0.0
    %853 = vmatprep.subr.mxu0 0.0
    %854 = vmatpush2.xpose.msra.mxu0 0.0
    %855 = vmatprep.subr.mxu0 0.0
    %856 = vmatpush2.xpose.msra.mxu0 0.0
    %857 = vmatprep.subr.mxu0 0.0
    %858 = vmatpush2.xpose.msra.mxu0 0.0
    %859 = vmatprep.mubr.f32.mxu0 0.0
    %860 = vmatmul.mubr.f32.gmra.mxu0 %v790
    %v861 = vpop.f32.mrf.mxu0
    %v862 = vadd.f32 0.0, %v861
    %v863 = vpop.f32.mrf.mxu0
    %864 = vdwg.mxu0
    %v865 = vsel %vm536, %v785, -inf
    %866 = vmax.xlane.f32.xlu0 %v865
    %v867 = vpop.xlane.xlu0 %866
    %v868 = vsel %vm536, %v862, -inf
    %869 = vmax.xlane.f32.xlu0 %v868
    %v870 = vpop.xlane.xlu0 %869
    %v871 = vsub.f32 %v785, %v867
    %v872 = vsub.f32 %v862, %v870
    %v873 = vmul.f32 %v871, 1.442695
    %v874 = vpow.pop %v873
    %v875 = vmul.f32 %v872, 1.442695
    %v876 = vpow.pop %v875
    %v877 = vsel %vm536, %v874, 0.0
    %878 = vadd.xlane.f32.xlu0 %v877
    %v879 = vpop.xlane.xlu0 %878
    %v880 = vsel %vm536, %v876, 0.0
    %881 = vadd.xlane.f32.xlu0 %v880
    %v882 = vpop.xlane.xlu0 %881
    %v883 = vrcp.pop %v879
    %v884 = vrcp.pop %v882
    %v885 = vmul.f32 %v874, %v883
    %v886 = vmul.f32 %v876, %v884
    %887 = vrot.lane.b32.xlu0 %v376, 96
    %v888 = vpop.permute.xlu0 %887
    %v891 = vsel %vm536, %v885, 0
    %893 = vmatprep.subr.mxu0 0.0
    %894 = vmatpush1.msra.mxu0 0.0
    %895 = vmatprep.subr.mxu0 0.0
    %896 = vmatpush1.msra.mxu0 0.0
    %897 = vmatprep.subr.mxu0 0.0
    %898 = vmatpush1.msra.mxu0 0.0
    %899 = vmatprep.subr.mxu0 0.0
    %900 = vmatpush1.msra.mxu0 0.0
    %901 = vmatprep.subr.mxu0 0.0
    %902 = vmatpush1.msra.mxu0 0.0
    %903 = vmatprep.subr.mxu0 0.0
    %904 = vmatpush1.msra.mxu0 0.0
    %905 = vmatprep.subr.mxu0 0.0
    %906 = vmatpush1.msra.mxu0 0.0
    %907 = vmatprep.subr.mxu0 0.0
    %908 = vmatpush1.msra.mxu0 0.0
    %909 = vmatprep.subr.mxu0 0.0
    %910 = vmatpush1.msra.mxu0 0.0
    %911 = vmatprep.subr.mxu0 0.0
    %912 = vmatpush1.msra.mxu0 0.0
    %913 = vmatprep.subr.mxu0 0.0
    %914 = vmatpush1.msra.mxu0 0.0
    %915 = vmatprep.subr.mxu0 0.0
    %916 = vmatpush1.msra.mxu0 0.0
    %917 = vmatprep.subr.mxu0 0.0
    %918 = vmatpush1.msra.mxu0 0.0
    %919 = vmatprep.subr.mxu0 0.0
    %920 = vmatpush1.msra.mxu0 0.0
    %921 = vmatprep.subr.mxu0 0.0
    %922 = vmatpush1.msra.mxu0 0.0
    %923 = vmatprep.subr.mxu0 0.0
    %924 = vmatpush1.msra.mxu0 %v888
    %925 = vmatprep.subr.mxu0 0.0
    %926 = vmatpush2.msra.mxu0 0.0
    %927 = vmatprep.subr.mxu0 0.0
    %928 = vmatpush2.msra.mxu0 0.0
    %929 = vmatprep.subr.mxu0 0.0
    %930 = vmatpush2.msra.mxu0 0.0
    %931 = vmatprep.subr.mxu0 0.0
    %932 = vmatpush2.msra.mxu0 0.0
    %933 = vmatprep.subr.mxu0 0.0
    %934 = vmatpush2.msra.mxu0 0.0
    %935 = vmatprep.subr.mxu0 0.0
    %936 = vmatpush2.msra.mxu0 0.0
    %937 = vmatprep.subr.mxu0 0.0
    %938 = vmatpush2.msra.mxu0 0.0
    %939 = vmatprep.subr.mxu0 0.0
    %940 = vmatpush2.msra.mxu0 0.0
    %941 = vmatprep.subr.mxu0 0.0
    %942 = vmatpush2.msra.mxu0 0.0
    %943 = vmatprep.subr.mxu0 0.0
    %944 = vmatpush2.msra.mxu0 0.0
    %945 = vmatprep.subr.mxu0 0.0
    %946 = vmatpush2.msra.mxu0 0.0
    %947 = vmatprep.subr.mxu0 0.0
    %948 = vmatpush2.msra.mxu0 0.0
    %949 = vmatprep.subr.mxu0 0.0
    %950 = vmatpush2.msra.mxu0 0.0
    %951 = vmatprep.subr.mxu0 0.0
    %952 = vmatpush2.msra.mxu0 0.0
    %953 = vmatprep.subr.mxu0 0.0
    %954 = vmatpush2.msra.mxu0 0.0
    %955 = vmatprep.subr.mxu0 0.0
    %956 = vmatpush2.msra.mxu0 0.0
    %957 = vmatprep.mubr.f32.mxu0 0.0
    %958 = vmatmul.mubr.f32.gmra.mxu0 %v891
    %v959 = vpop.f32.mrf.mxu0
    %v960 = vadd.f32 0.0, %v959
    %v961 = vpop.f32.mrf.mxu0
    %962 = vdwg.mxu0
    %963 = vrot.lane.b32.xlu0 %v381, 96
    %v964 = vpop.permute.xlu0 %963
    %v967 = vsel %vm536, %v886, 0
    %969 = vmatprep.subr.mxu0 0.0
    %970 = vmatpush1.msra.mxu0 0.0
    %971 = vmatprep.subr.mxu0 0.0
    %972 = vmatpush1.msra.mxu0 0.0
    %973 = vmatprep.subr.mxu0 0.0
    %974 = vmatpush1.msra.mxu0 0.0
    %975 = vmatprep.subr.mxu0 0.0
    %976 = vmatpush1.msra.mxu0 0.0
    %977 = vmatprep.subr.mxu0 0.0
    %978 = vmatpush1.msra.mxu0 0.0
    %979 = vmatprep.subr.mxu0 0.0
    %980 = vmatpush1.msra.mxu0 0.0
    %981 = vmatprep.subr.mxu0 0.0
    %982 = vmatpush1.msra.mxu0 0.0
    %983 = vmatprep.subr.mxu0 0.0
    %984 = vmatpush1.msra.mxu0 0.0
    %985 = vmatprep.subr.mxu0 0.0
    %986 = vmatpush1.msra.mxu0 0.0
    %987 = vmatprep.subr.mxu0 0.0
    %988 = vmatpush1.msra.mxu0 0.0
    %989 = vmatprep.subr.mxu0 0.0
    %990 = vmatpush1.msra.mxu0 0.0
    %991 = vmatprep.subr.mxu0 0.0
    %992 = vmatpush1.msra.mxu0 0.0
    %993 = vmatprep.subr.mxu0 0.0
    %994 = vmatpush1.msra.mxu0 0.0
    %995 = vmatprep.subr.mxu0 0.0
    %996 = vmatpush1.msra.mxu0 0.0
    %997 = vmatprep.subr.mxu0 0.0
    %998 = vmatpush1.msra.mxu0 0.0
    %999 = vmatprep.subr.mxu0 0.0
    %1000 = vmatpush1.msra.mxu0 %v964
    %1001 = vmatprep.subr.mxu0 0.0
    %1002 = vmatpush2.msra.mxu0 0.0
    %1003 = vmatprep.subr.mxu0 0.0
    %1004 = vmatpush2.msra.mxu0 0.0
    %1005 = vmatprep.subr.mxu0 0.0
    %1006 = vmatpush2.msra.mxu0 0.0
    %1007 = vmatprep.subr.mxu0 0.0
    %1008 = vmatpush2.msra.mxu0 0.0
    %1009 = vmatprep.subr.mxu0 0.0
    %1010 = vmatpush2.msra.mxu0 0.0
    %1011 = vmatprep.subr.mxu0 0.0
    %1012 = vmatpush2.msra.mxu0 0.0
    %1013 = vmatprep.subr.mxu0 0.0
    %1014 = vmatpush2.msra.mxu0 0.0
    %1015 = vmatprep.subr.mxu0 0.0
    %1016 = vmatpush2.msra.mxu0 0.0
    %1017 = vmatprep.subr.mxu0 0.0
    %1018 = vmatpush2.msra.mxu0 0.0
    %1019 = vmatprep.subr.mxu0 0.0
    %1020 = vmatpush2.msra.mxu0 0.0
    %1021 = vmatprep.subr.mxu0 0.0
    %1022 = vmatpush2.msra.mxu0 0.0
    %1023 = vmatprep.subr.mxu0 0.0
    %1024 = vmatpush2.msra.mxu0 0.0
    %1025 = vmatprep.subr.mxu0 0.0
    %1026 = vmatpush2.msra.mxu0 0.0
    %1027 = vmatprep.subr.mxu0 0.0
    %1028 = vmatpush2.msra.mxu0 0.0
    %1029 = vmatprep.subr.mxu0 0.0
    %1030 = vmatpush2.msra.mxu0 0.0
    %1031 = vmatprep.subr.mxu0 0.0
    %1032 = vmatpush2.msra.mxu0 0.0
    %1033 = vmatprep.mubr.f32.mxu0 0.0
    %1034 = vmatmul.mubr.f32.gmra.mxu0 %v967
    %v1035 = vpop.f32.mrf.mxu0
    %v1036 = vadd.f32 0.0, %v1035
    %v1037 = vpop.f32.mrf.mxu0
    %1038 = vdwg.mxu0
    %1041 = vrot.lane.b32.xlu0 %v960, 32
    %v1042 = vpop.permute.xlu0 %1041
    %1043 = vrot.lane.b32.xlu0 %v1036, 32
    %v1044 = vpop.permute.xlu0 %1043
    %v1047 = vsel %vm29, %v632, %v1042
    %v1048 = vsel %vm29, %v708, %v1044
    %v1049 = vld [vmem:[%s4] sm:$0xff]
    %v1050 = vld [vmem:[%s4 + $0x8] sm:$0xff]
    %v1051 = vld [vmem:[%s4 + $0x10] sm:$0xff]
    %v1052 = vld [vmem:[%s4 + $0x18] sm:$0xff]
    %v1053 = vld [vmem:[%s4 + $0x20] sm:$0xff]
    %v1054 = vld [vmem:[%s4 + $0x28] sm:$0xff]
    %v1055 = vld [vmem:[%s4 + $0x30] sm:$0xff]
    %v1056 = vld [vmem:[%s4 + $0x38] sm:$0xff]
    %v1057 = vld [vmem:[%s6] sm:$0x1]
    %v1058 = vlaneseq
    %v1059 = vshrl.u32 %v1058, 7
    %v1060 = vsub.s32 0, %v1059
    %v1061 = vrot.slane %v1057, %v1060
    %vm1062 = vcmask 523264
    %v1064 = vsel %vm1062, %v1047, 0
    %v1067 = vsel %vm1062, %v1048, 0
    %1069 = vmatprep.subr.mxu0 0.0
    %1070 = vmatpush1.msra.mxu0 0.0
    %1071 = vmatprep.subr.mxu0 0.0
    %1072 = vmatpush1.msra.mxu0 0.0
    %1073 = vmatprep.subr.mxu0 0.0
    %1074 = vmatpush1.msra.mxu0 0.0
    %1075 = vmatprep.subr.mxu0 0.0
    %1076 = vmatpush1.msra.mxu0 0.0
    %1077 = vmatprep.subr.mxu0 0.0
    %1078 = vmatpush1.msra.mxu0 0.0
    %1079 = vmatprep.subr.mxu0 0.0
    %1080 = vmatpush1.msra.mxu0 0.0
    %1081 = vmatprep.subr.mxu0 0.0
    %1082 = vmatpush1.msra.mxu0 0.0
    %1083 = vmatprep.subr.mxu0 0.0
    %1084 = vmatpush1.msra.mxu0 0.0
    %1085 = vmatprep.subr.mxu0 0.0
    %1086 = vmatpush1.msra.mxu0 %v1056
    %1087 = vmatprep.subr.mxu0 0.0
    %1088 = vmatpush1.msra.mxu0 %v1055
    %1089 = vmatprep.subr.mxu0 0.0
    %1090 = vmatpush1.msra.mxu0 %v1054
    %1091 = vmatprep.subr.mxu0 0.0
    %1092 = vmatpush1.msra.mxu0 %v1053
    %1093 = vmatprep.subr.mxu0 0.0
    %1094 = vmatpush1.msra.mxu0 %v1052
    %1095 = vmatprep.subr.mxu0 0.0
    %1096 = vmatpush1.msra.mxu0 %v1051
    %1097 = vmatprep.subr.mxu0 0.0
    %1098 = vmatpush1.msra.mxu0 %v1050
    %1099 = vmatprep.subr.mxu0 0.0
    %1100 = vmatpush1.msra.mxu0 %v1049
    %1101 = vmatprep.subr.mxu0 0.0
    %1102 = vmatpush2.msra.mxu0 0.0
    %1103 = vmatprep.subr.mxu0 0.0
    %1104 = vmatpush2.msra.mxu0 0.0
    %1105 = vmatprep.subr.mxu0 0.0
    %1106 = vmatpush2.msra.mxu0 0.0
    %1107 = vmatprep.subr.mxu0 0.0
    %1108 = vmatpush2.msra.mxu0 0.0
    %1109 = vmatprep.subr.mxu0 0.0
    %1110 = vmatpush2.msra.mxu0 0.0
    %1111 = vmatprep.subr.mxu0 0.0
    %1112 = vmatpush2.msra.mxu0 0.0
    %1113 = vmatprep.subr.mxu0 0.0
    %1114 = vmatpush2.msra.mxu0 0.0
    %1115 = vmatprep.subr.mxu0 0.0
    %1116 = vmatpush2.msra.mxu0 0.0
    %1117 = vmatprep.subr.mxu0 0.0
    %1118 = vmatpush2.msra.mxu0 0.0
    %1119 = vmatprep.subr.mxu0 0.0
    %1120 = vmatpush2.msra.mxu0 0.0
    %1121 = vmatprep.subr.mxu0 0.0
    %1122 = vmatpush2.msra.mxu0 0.0
    %1123 = vmatprep.subr.mxu0 0.0
    %1124 = vmatpush2.msra.mxu0 0.0
    %1125 = vmatprep.subr.mxu0 0.0
    %1126 = vmatpush2.msra.mxu0 0.0
    %1127 = vmatprep.subr.mxu0 0.0
    %1128 = vmatpush2.msra.mxu0 0.0
    %1129 = vmatprep.subr.mxu0 0.0
    %1130 = vmatpush2.msra.mxu0 0.0
    %1131 = vmatprep.subr.mxu0 0.0
    %1132 = vmatpush2.msra.mxu0 0.0
    %1133 = vmatprep.mubr.f32.mxu0 0.0
    %1134 = vmatmul.mubr.f32.gmra.mxu0 %v1064
    %v1135 = vpop.f32.mrf.mxu0
    %v1136 = vadd.f32 %v1061, %v1135
    %v1137 = vpop.f32.mrf.mxu0
    %1138 = vmatprep.mubr.f32.mxu0 0.0
    %1139 = vmatmul.mubr.f32.gmra.mxu0 %v1067
    %v1140 = vpop.f32.mrf.mxu0
    %v1141 = vadd.f32 %v1061, %v1140
    %v1142 = vpop.f32.mrf.mxu0
    %1143 = vdwg.mxu0
    %v1144 = vadd.f32 %v1136, %v27
    %v1145 = vadd.f32 %v1141, %v28
    %v1146 = vsel %vm29, %v1144, 0.0
    %1147 = vadd.xlane.f32.xlu0 %v1146
    %v1148 = vpop.xlane.xlu0 %1147
    %v1149 = vsel %vm29, %v1145, 0.0
    %1150 = vadd.xlane.f32.xlu0 %v1149
    %v1151 = vpop.xlane.xlu0 %1150
    %v1152 = vmul.f32 %v1148, %v36
    %v1153 = vmul.f32 %v1151, %v36
    %v1154 = vsub.f32 %v1144, %v1152
    %v1155 = vsub.f32 %v1145, %v1153
    %v1156 = vmul.f32 %v1154, %v1154
    %v1157 = vmul.f32 %v1155, %v1155
    %v1158 = vsel %vm29, %v1156, 0.0
    %1159 = vadd.xlane.f32.xlu0 %v1158
    %v1160 = vpop.xlane.xlu0 %1159
    %v1161 = vsel %vm29, %v1157, 0.0
    %1162 = vadd.xlane.f32.xlu0 %v1161
    %v1163 = vpop.xlane.xlu0 %1162
    %v1164 = vmul.f32 %v1160, %v36
    %v1165 = vmul.f32 %v1163, %v36
    %v1166 = vadd.f32 %v1164, 1e-05
    %v1167 = vadd.f32 %v1165, 1e-05
    %v1168 = vrsqrt.pop %v1166
    %v1169 = vrsqrt.pop %v1167
    %v1170 = vmul.f32 %v1154, %v1168
    %v1171 = vmul.f32 %v1155, %v1169
    %v1172 = vld [vmem:[%s4 + $0x40] sm:$0xff]
    %v1173 = vld [vmem:[%s4 + $0x48] sm:$0xff]
    %v1174 = vld [vmem:[%s4 + $0x50] sm:$0xff]
    %v1175 = vld [vmem:[%s4 + $0x58] sm:$0xff]
    %v1176 = vld [vmem:[%s6 + $0x1] sm:$0x1]
    %v1177 = vlaneseq
    %v1178 = vshrl.u32 %v1177, 7
    %v1179 = vsub.s32 0, %v1178
    %v1180 = vrot.slane %v1176, %v1179
    %v1182 = vsel %vm29, %v1170, 0
    %v1185 = vsel %vm29, %v1171, 0
    %1187 = vmatprep.subr.mxu0 0.0
    %1188 = vmatpush1.msra.mxu0 0.0
    %1189 = vmatprep.subr.mxu0 0.0
    %1190 = vmatpush1.msra.mxu0 0.0
    %1191 = vmatprep.subr.mxu0 0.0
    %1192 = vmatpush1.msra.mxu0 0.0
    %1193 = vmatprep.subr.mxu0 0.0
    %1194 = vmatpush1.msra.mxu0 0.0
    %1195 = vmatprep.subr.mxu0 0.0
    %1196 = vmatpush1.msra.mxu0 0.0
    %1197 = vmatprep.subr.mxu0 0.0
    %1198 = vmatpush1.msra.mxu0 0.0
    %1199 = vmatprep.subr.mxu0 0.0
    %1200 = vmatpush1.msra.mxu0 0.0
    %1201 = vmatprep.subr.mxu0 0.0
    %1202 = vmatpush1.msra.mxu0 0.0
    %1203 = vmatprep.subr.mxu0 0.0
    %1204 = vmatpush1.msra.mxu0 0.0
    %1205 = vmatprep.subr.mxu0 0.0
    %1206 = vmatpush1.msra.mxu0 0.0
    %1207 = vmatprep.subr.mxu0 0.0
    %1208 = vmatpush1.msra.mxu0 0.0
    %1209 = vmatprep.subr.mxu0 0.0
    %1210 = vmatpush1.msra.mxu0 0.0
    %1211 = vmatprep.subr.mxu0 0.0
    %1212 = vmatpush1.msra.mxu0 %v1175
    %1213 = vmatprep.subr.mxu0 0.0
    %1214 = vmatpush1.msra.mxu0 %v1174
    %1215 = vmatprep.subr.mxu0 0.0
    %1216 = vmatpush1.msra.mxu0 %v1173
    %1217 = vmatprep.subr.mxu0 0.0
    %1218 = vmatpush1.msra.mxu0 %v1172
    %1219 = vmatprep.subr.mxu0 0.0
    %1220 = vmatpush2.msra.mxu0 0.0
    %1221 = vmatprep.subr.mxu0 0.0
    %1222 = vmatpush2.msra.mxu0 0.0
    %1223 = vmatprep.subr.mxu0 0.0
    %1224 = vmatpush2.msra.mxu0 0.0
    %1225 = vmatprep.subr.mxu0 0.0
    %1226 = vmatpush2.msra.mxu0 0.0
    %1227 = vmatprep.subr.mxu0 0.0
    %1228 = vmatpush2.msra.mxu0 0.0
    %1229 = vmatprep.subr.mxu0 0.0
    %1230 = vmatpush2.msra.mxu0 0.0
    %1231 = vmatprep.subr.mxu0 0.0
    %1232 = vmatpush2.msra.mxu0 0.0
    %1233 = vmatprep.subr.mxu0 0.0
    %1234 = vmatpush2.msra.mxu0 0.0
    %1235 = vmatprep.subr.mxu0 0.0
    %1236 = vmatpush2.msra.mxu0 0.0
    %1237 = vmatprep.subr.mxu0 0.0
    %1238 = vmatpush2.msra.mxu0 0.0
    %1239 = vmatprep.subr.mxu0 0.0
    %1240 = vmatpush2.msra.mxu0 0.0
    %1241 = vmatprep.subr.mxu0 0.0
    %1242 = vmatpush2.msra.mxu0 0.0
    %1243 = vmatprep.subr.mxu0 0.0
    %1244 = vmatpush2.msra.mxu0 0.0
    %1245 = vmatprep.subr.mxu0 0.0
    %1246 = vmatpush2.msra.mxu0 0.0
    %1247 = vmatprep.subr.mxu0 0.0
    %1248 = vmatpush2.msra.mxu0 0.0
    %1249 = vmatprep.subr.mxu0 0.0
    %1250 = vmatpush2.msra.mxu0 0.0
    %1251 = vmatprep.mubr.f32.mxu0 0.0
    %1252 = vmatmul.mubr.f32.gmra.mxu0 %v1182
    %v1253 = vpop.f32.mrf.mxu0
    %v1254 = vadd.f32 %v1180, %v1253
    %v1255 = vpop.f32.mrf.mxu0
    %1256 = vmatprep.mubr.f32.mxu0 0.0
    %1257 = vmatmul.mubr.f32.gmra.mxu0 %v1185
    %v1258 = vpop.f32.mrf.mxu0
    %v1259 = vadd.f32 %v1180, %v1258
    %v1260 = vpop.f32.mrf.mxu0
    %1261 = vdwg.mxu0
    %v1262 = vadd.f32 %v1254, %v1144
    %v1263 = vadd.f32 %v1259, %v1145
    %1264 = vst.msk [vmem:[#allocation2] sm:$0xff] %vm29, %v1262
    %1265 = vst.msk [vmem:[#allocation2 + $0x8] sm:$0xff] %vm29, %v1263
    // Predicated region
    $region30: #{tpu_custom_call.1} parent=1 // pred_check
      _
    $region31: #{tpu_custom_call.1} parent=1 // pred_check_branch
      %1267 = sbr.rel (0) target = $region33
    $region32: #{tpu_custom_call.1} parent=1 // pred_region
      %s1269 = ssub.s32 256, 256
      %1270 = vsyncadd [#allocation3], %s1269
      %s1271 = sshll.u32 [#allocation2], 4
      %s1272 = int_to_ptr.vmem [resolvable:$true] %s1271
      %1277 = dma.vmem_to_hbm [thread:$0]  %s1272, 256, %s7, [#allocation3], 128, 128, 8
    $region33: #{tpu_custom_call.1} parent=1 // pred_fallthru
      _
    // Predicated region
    $region34: #{tpu_custom_call.1} parent=1 // pred_check
      _
    $region35: #{tpu_custom_call.1} parent=1 // pred_check_branch
      %1279 = sbr.rel (0) target = $region37
    $region36: #{tpu_custom_call.1} parent=1 // pred_region
      %1280 = dma.done [#allocation3], 256
    $region37: #{tpu_custom_call.1} parent=1 // pred_fallthru
      _
    %1281 = vsyncpa [#allocation3], 1

</llo_original>
